<compile_context>
chip_gen: v6e
topology: v6e:2x2x1
jax: 0.10.0
libtpu: 0.0.40
codegen_flags: <defaults>
</compile_context>

<pallas_src>
import math
import jax
import jax.numpy as jnp
from jax.experimental import pallas as pl
from jax.experimental.pallas import tpu as pltpu

_EPS = 1e-5
_VMEM_LIMIT = 48 * 1024 * 1024   # leaves headroom under v7x's 64 MiB physical VMEM


# --------------------------- kernels ---------------------------

def _make_conv_stats_kernel(H, W, Cin, Cout):
    HW = H * W

    def kernel(x_ref, w_ref, y_ref, sum_ref, sq_ref, xpad_ref):
        # x_ref   : (1, H, W, Cin)     bf16  one image (grid over N)
        # w_ref   : (3, 3*Cin, Cout)   bf16  kw taps packed into K
        # y_ref   : (1, H*W, Cout)     f32   conv output (pre-BN)
        # sum_ref : (1, 1, Cout)       f32   per-image sum over H*W
        # sq_ref  : (1, 1, Cout)       f32   per-image sum of squares
        # xpad_ref: (H+2, W+2, Cin)    f32   zero-padded image (scratch)

        # padding=1 handled in VMEM: zero the halo, copy the interior.
        xpad_ref[...] = jnp.zeros_like(xpad_ref)
        xpad_ref[pl.ds(1, H), pl.ds(1, W), :] = x_ref[0].astype(jnp.float32)

        # 3x3 conv as 3 matmuls with contraction depth K = 3*Cin,
        # accumulated in f32 directly into the (VMEM) output ref.
        for kh in range(3):
            taps = [
                xpad_ref[pl.ds(kh, H), pl.ds(kw, W), :].reshape(HW, Cin)
                for kw in range(3)
            ]
            patch = jnp.concatenate(taps, axis=1).astype(jnp.bfloat16)
            contrib = jnp.dot(patch, w_ref[kh],
                              preferred_element_type=jnp.float32)
            if kh == 0:
                y_ref[0] = contrib
            else:
                y_ref[0] = y_ref[0] + contrib

        # one-pass BN partials (global reduction finished in plain JAX so the
        # batch statistics stay exact across the tiled grid).
        acc = y_ref[0]
        sum_ref[0] = jnp.sum(acc, axis=0, keepdims=True)
        sq_ref[0] = jnp.sum(acc * acc, axis=0, keepdims=True)

    return kernel


def _make_bn_relu_pool_kernel(H, W, Cout):
    Ho, Wo = H // 2, W // 2

    def kernel(y_ref, scale_ref, shift_ref, o_ref):
        # y_ref     : (1, H*W, Cout)    f32 conv output
        # scale_ref : (1, Cout)         f32 gamma * rsqrt(var + eps)
        # shift_ref : (1, Cout)         f32 beta - mean * scale
        # o_ref     : (1, Ho, Wo, Cout) bf16
        y = y_ref[0] * scale_ref[...] + shift_ref[...]       # folded BN affine
        y = jnp.maximum(y, 0.0)                              # ReLU
        y = y.reshape(H, W, Cout)
        y = jnp.max(y.reshape(H, Wo, 2, Cout), axis=2)       # pool along W
        y = jnp.max(y.reshape(Ho, 2, Wo, Cout), axis=1)      # pool along H
        o_ref[0] = y.astype(o_ref.dtype)

    return kernel


# --------------------------- stage wrapper ---------------------------

def conv_bn_relu_pool_stage(x_nhwc, w_packed, gamma, beta):
    """One ConvNet stage.

    x_nhwc  : (N, H, W, Cin) bf16
    w_packed: (3, 3*Cin, Cout) bf16 with w_packed[kh, kw*Cin + c, o]
    gamma, beta: (1, Cout) f32
    returns : (N, H//2, W//2, Cout) bf16
    """
    N, H, W, Cin = x_nhwc.shape
    Cout = w_packed.shape[-1]
    assert H % 2 == 0 and W % 2 == 0, "MaxPool2d(2) needs even spatial dims"
    Ho, Wo = H // 2, W // 2
    HW = H * W

    cparams = pltpu.CompilerParams(
        dimension_semantics=("parallel",),     # shard batch across TCs (v7x)
        vmem_limit_bytes=_VMEM_LIMIT,
    )

    # ---- pass 1: conv (bf16 MXU, f32 acc) + per-image BN partial sums ----
    y_conv, psum, psq = pl.pallas_call(
        _make_conv_stats_kernel(H, W, Cin, Cout),
        out_shape=(
            jax.ShapeDtypeStruct((N, HW, Cout), jnp.float32),
            jax.ShapeDtypeStruct((N, 1, Cout), jnp.float32),
            jax.ShapeDtypeStruct((N, 1, Cout), jnp.float32),
        ),
        grid=(N,),
        in_specs=[
            pl.BlockSpec((1, H, W, Cin), lambda n: (n, 0, 0, 0)),
            pl.BlockSpec((3, 3 * Cin, Cout), lambda n: (0, 0, 0)),
        ],
        out_specs=(
            pl.BlockSpec((1, HW, Cout), lambda n: (n, 0, 0)),
            pl.BlockSpec((1, 1, Cout), lambda n: (n, 0, 0)),
            pl.BlockSpec((1, 1, Cout), lambda n: (n, 0, 0)),
        ),
        scratch_shapes=[pltpu.VMEM((H + 2, W + 2, Cin), jnp.float32)],
        compiler_params=cparams,
    )(x_nhwc, w_packed)

    # ---- global batch statistics + folded BN affine (tiny, plain JAX) ----
    cnt = float(N * HW)
    mean = jnp.sum(psum, axis=0) / cnt                       # (1, Cout)
    ex2 = jnp.sum(psq, axis=0) / cnt
    var = jnp.maximum(ex2 - mean * mean, 0.0)                # biased variance
    scale = gamma * jax.lax.rsqrt(var + _EPS)                # (1, Cout)
    shift = beta - mean * scale

    # ---- pass 2: BN (scale/shift) + ReLU + MaxPool2 ----
    out = pl.pallas_call(
        _make_bn_relu_pool_kernel(H, W, Cout),
        out_shape=jax.ShapeDtypeStruct((N, Ho, Wo, Cout), jnp.bfloat16),
        grid=(N,),
        in_specs=[
            pl.BlockSpec((1, HW, Cout), lambda n: (n, 0, 0)),
            pl.BlockSpec((1, Cout), lambda n: (0, 0)),
            pl.BlockSpec((1, Cout), lambda n: (0, 0)),
        ],
        out_specs=pl.BlockSpec((1, Ho, Wo, Cout), lambda n: (n, 0, 0, 0)),
        compiler_params=cparams,
    )(y_conv, scale, shift)
    return out


# --------------------------- model ---------------------------

class ConvNetPallas:
    """JAX/Pallas port of the PyTorch ConvNet module (forward only).

    BatchNorm uses batch statistics (training-mode / transductive BN) with
    gamma=1, beta=0 matching nn.BatchNorm2d defaults.
    """

    def __init__(self, num_stage, out_channels, required_input_size, key):
        assert num_stage > 0
        self.num_stage = num_stage
        self.out_channels = (
            [out_channels] * num_stage if isinstance(out_channels, int)
            else list(out_channels))
        assert len(self.out_channels) == num_stage
        self.in_channels = [3, *self.out_channels[:-1]]
        self.image_height, self.image_width = (
            [required_input_size] * 2 if isinstance(required_input_size, int)
            else required_input_size)
        factor = 1.0 / math.pow(2, num_stage)
        self.expected_out_size = (
            self.out_channels[-1],
            int(self.image_height * factor),
            int(self.image_width * factor))

        # deterministic init (kaiming-like std for conv weights; gamma=1,
        # beta=0 as in nn.BatchNorm2d defaults)
        self.weights, self.packed_weights = [], []
        self.gammas, self.betas = [], []
        for i in range(num_stage):
            key, sub = jax.random.split(key)
            cin, cout = self.in_channels[i], self.out_channels[i]
            std = math.sqrt(2.0 / (9 * cin))
            w = std * jax.random.normal(sub, (3, 3, cin, cout), jnp.float32)
            self.weights.append(w)
            # pack kw taps into the contraction dim, bf16 for the MXU
            self.packed_weights.append(
                w.astype(jnp.bfloat16).reshape(3, 3 * cin, cout))
            self.gammas.append(jnp.ones((1, cout), jnp.float32))
            self.betas.append(jnp.zeros((1, cout), jnp.float32))

    def __call__(self, x_nchw):
        N, C, H, W = x_nchw.shape
        assert C == self.in_channels[0]
        assert H == self.image_height
        assert W == self.image_width
        x = jnp.transpose(x_nchw, (0, 2, 3, 1)).astype(jnp.bfloat16)  # NHWC
        for i in range(self.num_stage):
            x = conv_bn_relu_pool_stage(
                x, self.packed_weights[i], self.gammas[i], self.betas[i])
        _, Ho, Wo, _ = x.shape
        assert Ho == self.expected_out_size[1]
        assert Wo == self.expected_out_size[2]
        return jnp.transpose(x.astype(jnp.float32), (0, 3, 1, 2))     # NCHW


# ---------------- pure-JAX reference (emulating kernel numerics) ----------------

def _ref_stage(x, w, gamma, beta):
    # match the kernel: bf16 conv inputs/weights, f32 accumulation
    xb = x.astype(jnp.bfloat16).astype(jnp.float32)
    wb = w.astype(jnp.bfloat16).astype(jnp.float32)
    y = jax.lax.conv_general_dilated(
        xb, wb, window_strides=(1, 1), padding="SAME",
        dimension_numbers=("NHWC", "HWIO", "NHWC"))
    mean = y.mean(axis=(0, 1, 2), keepdims=True)
    var = ((y - mean) ** 2).mean(axis=(0, 1, 2), keepdims=True)
    y = (y - mean) * jax.lax.rsqrt(var + _EPS)
    y = y * gamma.reshape(1, 1, 1, -1) + beta.reshape(1, 1, 1, -1)
    y = jnp.maximum(y, 0.0)
    n, h, wdt, c = y.shape
    y = y.reshape(n, h // 2, 2, wdt // 2, 2, c).max(axis=(2, 4))
    # kernel keeps inter-stage activations in bf16
    return y.astype(jnp.bfloat16).astype(jnp.float32)


def _ref_forward(model, x_nchw):
    x = jnp.transpose(x_nchw, (0, 2, 3, 1))
    for i in range(model.num_stage):
        x = _ref_stage(x, model.weights[i], model.gammas[i], model.betas[i])
    return jnp.transpose(x, (0, 3, 1, 2))


if __name__ == "__main__":
    key = jax.random.PRNGKey(0)
    key, xkey, pkey = jax.random.split(key, 3)

    # small shapes: batch=2, 3 input channels, 16x16 images, 2 stages
    num_stage = 2
    out_channels = (4, 8)
    required_input_size = 16

    model = ConvNetPallas(num_stage, out_channels, required_input_size, pkey)
    x = jax.random.normal(xkey, (2, 3, 16, 16), jnp.float32)

    out = jax.block_until_ready(model(x))

    expected_shape = (2,) + model.expected_out_size   # (2, 8, 4, 4)
    assert out.shape == expected_shape, (out.shape, expected_shape)

    ref = jax.block_until_ready(_ref_forward(model, x))
    max_err = float(jnp.max(jnp.abs(out - ref)))
    assert jnp.allclose(out, ref, atol=2e-2, rtol=2e-2), max_err

    print("KERNEL_OK")
</pallas_src>

<mosaic_0001>
module attributes {stable_mosaic.version = 11 : i64} {
  func.func @kernel(%arg0: i32, %arg1: memref<1x16x16x3xbf16, #tpu.memory_space<vmem>>, %arg2: memref<3x9x4xbf16, #tpu.memory_space<vmem>>, %arg3: memref<1x256x4xf32, #tpu.memory_space<vmem>>, %arg4: memref<1x1x4xf32, #tpu.memory_space<vmem>>, %arg5: memref<1x1x4xf32, #tpu.memory_space<vmem>>, %arg6: memref<18x18x3xf32, #tpu.memory_space<vmem>>) attributes {dimension_semantics = [#tpu.dimension_semantics<parallel>], iteration_bounds = array<i64: 2>, scalar_prefetch = 0 : i64, scratch_operands = 1 : i64, tpu.core_type = #tpu.core_type<tc>, window_params = [{transform_indices = @transform_0, window_bounds = array<i64: 1, 16, 16, 3>}, {pipeline_mode = #tpu.pipeline_mode<synchronous>, transform_indices = @transform_1, window_bounds = array<i64: 3, 9, 4>}, {transform_indices = @transform_2, window_bounds = array<i64: 1, 256, 4>}, {transform_indices = @transform_3, window_bounds = array<i64: 1, 1, 4>}, {transform_indices = @transform_4, window_bounds = array<i64: 1, 1, 4>}]} {
    %cst = arith.constant 0.000000e+00 : f32
    %0 = vector.broadcast %cst : f32 to vector<18x18x3xf32>
    %c0 = arith.constant 0 : index
    %c0_0 = arith.constant 0 : index
    %c0_1 = arith.constant 0 : index
    %1 = vector.load %arg6[%c0, %c0_0, %c0_1] : memref<18x18x3xf32, #tpu.memory_space<vmem>>, vector<18x18x3xf32>
    tpu.vector_store %arg6[%c0, %c0_0, %c0_1], %0 {strides = array<i32>} : memref<18x18x3xf32, #tpu.memory_space<vmem>>, vector<18x18x3xf32>,
    %c0_2 = arith.constant 0 : index
    %c0_3 = arith.constant 0 : index
    %c0_4 = arith.constant 0 : index
    %c0_5 = arith.constant 0 : index
    %2 = vector.load %arg1[%c0_2, %c0_3, %c0_4, %c0_5] : memref<1x16x16x3xbf16, #tpu.memory_space<vmem>>, vector<1x16x16x3xbf16>
    %3 = vector.shape_cast %2 : vector<1x16x16x3xbf16> to vector<16x16x3xbf16>
    %4 = arith.extf %3 : vector<16x16x3xbf16> to vector<16x16x3xf32>
    %c1 = arith.constant 1 : index
    %c1_6 = arith.constant 1 : index
    %c0_7 = arith.constant 0 : index
    %5 = vector.load %arg6[%c1, %c1_6, %c0_7] : memref<18x18x3xf32, #tpu.memory_space<vmem>>, vector<16x16x3xf32>
    tpu.vector_store %arg6[%c1, %c1_6, %c0_7], %4 {strides = array<i32>} : memref<18x18x3xf32, #tpu.memory_space<vmem>>, vector<16x16x3xf32>,
    %c0_8 = arith.constant 0 : index
    %c0_9 = arith.constant 0 : index
    %c0_10 = arith.constant 0 : index
    %6 = vector.load %arg6[%c0_8, %c0_9, %c0_10] : memref<18x18x3xf32, #tpu.memory_space<vmem>>, vector<16x16x3xf32>
    %7 = vector.shape_cast %6 : vector<16x16x3xf32> to vector<256x3xf32>
    %c0_11 = arith.constant 0 : index
    %c1_12 = arith.constant 1 : index
    %c0_13 = arith.constant 0 : index
    %8 = vector.load %arg6[%c0_11, %c1_12, %c0_13] : memref<18x18x3xf32, #tpu.memory_space<vmem>>, vector<16x16x3xf32>
    %9 = vector.shape_cast %8 : vector<16x16x3xf32> to vector<256x3xf32>
    %c0_14 = arith.constant 0 : index
    %c2 = arith.constant 2 : index
    %c0_15 = arith.constant 0 : index
    %10 = vector.load %arg6[%c0_14, %c2, %c0_15] : memref<18x18x3xf32, #tpu.memory_space<vmem>>, vector<16x16x3xf32>
    %11 = vector.shape_cast %10 : vector<16x16x3xf32> to vector<256x3xf32>
    %12 = tpu.concatenate %7, %9, %11 in 1 : vector<256x3xf32>, vector<256x3xf32>, vector<256x3xf32> -> vector<256x9xf32>
    %13 = arith.truncf %12 : vector<256x9xf32> to vector<256x9xbf16>
    %c0_16 = arith.constant 0 : index
    %c0_17 = arith.constant 0 : index
    %c0_18 = arith.constant 0 : index
    %14 = vector.load %arg2[%c0_16, %c0_17, %c0_18] : memref<3x9x4xbf16, #tpu.memory_space<vmem>>, vector<1x9x4xbf16>
    %15 = vector.shape_cast %14 : vector<1x9x4xbf16> to vector<9x4xbf16>
    %cst_19 = arith.constant dense<0.000000e+00> : vector<256x4xf32>
    %16 = tpu.matmul %13, %15, %cst_19 {dimension_numbers = #tpu.dot_dimension_numbers<[1], [0], [0], [1], [0, 0, 1, 1], [], []>} : vector<256x9xbf16>, vector<9x4xbf16>, vector<256x4xf32> -> vector<256x4xf32>
    %c0_20 = arith.constant 0 : index
    %c0_21 = arith.constant 0 : index
    %c0_22 = arith.constant 0 : index
    %17 = vector.load %arg3[%c0_20, %c0_21, %c0_22] : memref<1x256x4xf32, #tpu.memory_space<vmem>>, vector<1x256x4xf32>
    %18 = vector.shape_cast %17 : vector<1x256x4xf32> to vector<256x4xf32>
    %19 = vector.shape_cast %16 : vector<256x4xf32> to vector<1x256x4xf32>
    tpu.vector_store %arg3[%c0_20, %c0_21, %c0_22], %19 {strides = array<i32>} : memref<1x256x4xf32, #tpu.memory_space<vmem>>, vector<1x256x4xf32>,
    %c1_23 = arith.constant 1 : index
    %c0_24 = arith.constant 0 : index
    %c0_25 = arith.constant 0 : index
    %20 = vector.load %arg6[%c1_23, %c0_24, %c0_25] : memref<18x18x3xf32, #tpu.memory_space<vmem>>, vector<16x16x3xf32>
    %21 = vector.shape_cast %20 : vector<16x16x3xf32> to vector<256x3xf32>
    %c1_26 = arith.constant 1 : index
    %c1_27 = arith.constant 1 : index
    %c0_28 = arith.constant 0 : index
    %22 = vector.load %arg6[%c1_26, %c1_27, %c0_28] : memref<18x18x3xf32, #tpu.memory_space<vmem>>, vector<16x16x3xf32>
    %23 = vector.shape_cast %22 : vector<16x16x3xf32> to vector<256x3xf32>
    %c1_29 = arith.constant 1 : index
    %c2_30 = arith.constant 2 : index
    %c0_31 = arith.constant 0 : index
    %24 = vector.load %arg6[%c1_29, %c2_30, %c0_31] : memref<18x18x3xf32, #tpu.memory_space<vmem>>, vector<16x16x3xf32>
    %25 = vector.shape_cast %24 : vector<16x16x3xf32> to vector<256x3xf32>
    %26 = tpu.concatenate %21, %23, %25 in 1 : vector<256x3xf32>, vector<256x3xf32>, vector<256x3xf32> -> vector<256x9xf32>
    %27 = arith.truncf %26 : vector<256x9xf32> to vector<256x9xbf16>
    %c1_32 = arith.constant 1 : index
    %c0_33 = arith.constant 0 : index
    %c0_34 = arith.constant 0 : index
    %28 = vector.load %arg2[%c1_32, %c0_33, %c0_34] : memref<3x9x4xbf16, #tpu.memory_space<vmem>>, vector<1x9x4xbf16>
    %29 = vector.shape_cast %28 : vector<1x9x4xbf16> to vector<9x4xbf16>
    %cst_35 = arith.constant dense<0.000000e+00> : vector<256x4xf32>
    %30 = tpu.matmul %27, %29, %cst_35 {dimension_numbers = #tpu.dot_dimension_numbers<[1], [0], [0], [1], [0, 0, 1, 1], [], []>} : vector<256x9xbf16>, vector<9x4xbf16>, vector<256x4xf32> -> vector<256x4xf32>
    %c0_36 = arith.constant 0 : index
    %c0_37 = arith.constant 0 : index
    %c0_38 = arith.constant 0 : index
    %31 = vector.load %arg3[%c0_36, %c0_37, %c0_38] : memref<1x256x4xf32, #tpu.memory_space<vmem>>, vector<1x256x4xf32>
    %32 = vector.shape_cast %31 : vector<1x256x4xf32> to vector<256x4xf32>
    %33 = arith.addf %32, %30 : vector<256x4xf32>
    %c0_39 = arith.constant 0 : index
    %c0_40 = arith.constant 0 : index
    %c0_41 = arith.constant 0 : index
    %34 = vector.load %arg3[%c0_39, %c0_40, %c0_41] : memref<1x256x4xf32, #tpu.memory_space<vmem>>, vector<1x256x4xf32>
    %35 = vector.shape_cast %34 : vector<1x256x4xf32> to vector<256x4xf32>
    %36 = vector.shape_cast %33 : vector<256x4xf32> to vector<1x256x4xf32>
    tpu.vector_store %arg3[%c0_39, %c0_40, %c0_41], %36 {strides = array<i32>} : memref<1x256x4xf32, #tpu.memory_space<vmem>>, vector<1x256x4xf32>,
    %c2_42 = arith.constant 2 : index
    %c0_43 = arith.constant 0 : index
    %c0_44 = arith.constant 0 : index
    %37 = vector.load %arg6[%c2_42, %c0_43, %c0_44] : memref<18x18x3xf32, #tpu.memory_space<vmem>>, vector<16x16x3xf32>
    %38 = vector.shape_cast %37 : vector<16x16x3xf32> to vector<256x3xf32>
    %c2_45 = arith.constant 2 : index
    %c1_46 = arith.constant 1 : index
    %c0_47 = arith.constant 0 : index
    %39 = vector.load %arg6[%c2_45, %c1_46, %c0_47] : memref<18x18x3xf32, #tpu.memory_space<vmem>>, vector<16x16x3xf32>
    %40 = vector.shape_cast %39 : vector<16x16x3xf32> to vector<256x3xf32>
    %c2_48 = arith.constant 2 : index
    %c2_49 = arith.constant 2 : index
    %c0_50 = arith.constant 0 : index
    %41 = vector.load %arg6[%c2_48, %c2_49, %c0_50] : memref<18x18x3xf32, #tpu.memory_space<vmem>>, vector<16x16x3xf32>
    %42 = vector.shape_cast %41 : vector<16x16x3xf32> to vector<256x3xf32>
    %43 = tpu.concatenate %38, %40, %42 in 1 : vector<256x3xf32>, vector<256x3xf32>, vector<256x3xf32> -> vector<256x9xf32>
    %44 = arith.truncf %43 : vector<256x9xf32> to vector<256x9xbf16>
    %c2_51 = arith.constant 2 : index
    %c0_52 = arith.constant 0 : index
    %c0_53 = arith.constant 0 : index
    %45 = vector.load %arg2[%c2_51, %c0_52, %c0_53] : memref<3x9x4xbf16, #tpu.memory_space<vmem>>, vector<1x9x4xbf16>
    %46 = vector.shape_cast %45 : vector<1x9x4xbf16> to vector<9x4xbf16>
    %cst_54 = arith.constant dense<0.000000e+00> : vector<256x4xf32>
    %47 = tpu.matmul %44, %46, %cst_54 {dimension_numbers = #tpu.dot_dimension_numbers<[1], [0], [0], [1], [0, 0, 1, 1], [], []>} : vector<256x9xbf16>, vector<9x4xbf16>, vector<256x4xf32> -> vector<256x4xf32>
    %c0_55 = arith.constant 0 : index
    %c0_56 = arith.constant 0 : index
    %c0_57 = arith.constant 0 : index
    %48 = vector.load %arg3[%c0_55, %c0_56, %c0_57] : memref<1x256x4xf32, #tpu.memory_space<vmem>>, vector<1x256x4xf32>
    %49 = vector.shape_cast %48 : vector<1x256x4xf32> to vector<256x4xf32>
    %50 = arith.addf %49, %47 : vector<256x4xf32>
    %c0_58 = arith.constant 0 : index
    %c0_59 = arith.constant 0 : index
    %c0_60 = arith.constant 0 : index
    %51 = vector.load %arg3[%c0_58, %c0_59, %c0_60] : memref<1x256x4xf32, #tpu.memory_space<vmem>>, vector<1x256x4xf32>
    %52 = vector.shape_cast %51 : vector<1x256x4xf32> to vector<256x4xf32>
    %53 = vector.shape_cast %50 : vector<256x4xf32> to vector<1x256x4xf32>
    tpu.vector_store %arg3[%c0_58, %c0_59, %c0_60], %53 {strides = array<i32>} : memref<1x256x4xf32, #tpu.memory_space<vmem>>, vector<1x256x4xf32>,
    %c0_61 = arith.constant 0 : index
    %c0_62 = arith.constant 0 : index
    %c0_63 = arith.constant 0 : index
    %54 = vector.load %arg3[%c0_61, %c0_62, %c0_63] : memref<1x256x4xf32, #tpu.memory_space<vmem>>, vector<1x256x4xf32>
    %55 = vector.shape_cast %54 : vector<1x256x4xf32> to vector<256x4xf32>
    %cst_64 = arith.constant dense<0.000000e+00> : vector<4xf32>
    %56 = vector.multi_reduction <add>, %55, %cst_64 [0] : vector<256x4xf32> to vector<4xf32>
    %57 = vector.shape_cast %56 : vector<4xf32> to vector<1x4xf32>
    %c0_65 = arith.constant 0 : index
    %c0_66 = arith.constant 0 : index
    %c0_67 = arith.constant 0 : index
    %58 = vector.load %arg4[%c0_65, %c0_66, %c0_67] : memref<1x1x4xf32, #tpu.memory_space<vmem>>, vector<1x1x4xf32>
    %59 = vector.shape_cast %58 : vector<1x1x4xf32> to vector<1x4xf32>
    %60 = vector.shape_cast %57 : vector<1x4xf32> to vector<1x1x4xf32>
    tpu.vector_store %arg4[%c0_65, %c0_66, %c0_67], %60 {strides = array<i32>} : memref<1x1x4xf32, #tpu.memory_space<vmem>>, vector<1x1x4xf32>,
    %61 = arith.mulf %55, %55 : vector<256x4xf32>
    %cst_68 = arith.constant dense<0.000000e+00> : vector<4xf32>
    %62 = vector.multi_reduction <add>, %61, %cst_68 [0] : vector<256x4xf32> to vector<4xf32>
    %63 = vector.shape_cast %62 : vector<4xf32> to vector<1x4xf32>
    %c0_69 = arith.constant 0 : index
    %c0_70 = arith.constant 0 : index
    %c0_71 = arith.constant 0 : index
    %64 = vector.load %arg5[%c0_69, %c0_70, %c0_71] : memref<1x1x4xf32, #tpu.memory_space<vmem>>, vector<1x1x4xf32>
    %65 = vector.shape_cast %64 : vector<1x1x4xf32> to vector<1x4xf32>
    %66 = vector.shape_cast %63 : vector<1x4xf32> to vector<1x1x4xf32>
    tpu.vector_store %arg5[%c0_69, %c0_70, %c0_71], %66 {strides = array<i32>} : memref<1x1x4xf32, #tpu.memory_space<vmem>>, vector<1x1x4xf32>,
    return
  }
  func.func @transform_0(%arg0: i32) -> (i32, i32, i32, i32) {
    %c0_i32 = arith.constant 0 : i32
    %c0_i32_0 = arith.constant 0 : i32
    %c0_i32_1 = arith.constant 0 : i32
    %c0_i32_2 = arith.constant 0 : i32
    return %arg0, %c0_i32, %c0_i32_0, %c0_i32_1 : i32, i32, i32, i32
  }
  func.func @transform_1(%arg0: i32) -> (i32, i32, i32) {
    %c0_i32 = arith.constant 0 : i32
    %c0_i32_0 = arith.constant 0 : i32
    %c0_i32_1 = arith.constant 0 : i32
    %c0_i32_2 = arith.constant 0 : i32
    return %c0_i32, %c0_i32_0, %c0_i32_1 : i32, i32, i32
  }
  func.func @transform_2(%arg0: i32) -> (i32, i32, i32) {
    %c0_i32 = arith.constant 0 : i32
    %c0_i32_0 = arith.constant 0 : i32
    %c0_i32_1 = arith.constant 0 : i32
    return %arg0, %c0_i32, %c0_i32_0 : i32, i32, i32
  }
  func.func @transform_3(%arg0: i32) -> (i32, i32, i32) {
    %c0_i32 = arith.constant 0 : i32
    %c0_i32_0 = arith.constant 0 : i32
    %c0_i32_1 = arith.constant 0 : i32
    return %arg0, %c0_i32, %c0_i32_0 : i32, i32, i32
  }
  func.func @transform_4(%arg0: i32) -> (i32, i32, i32) {
    %c0_i32 = arith.constant 0 : i32
    %c0_i32_0 = arith.constant 0 : i32
    %c0_i32_1 = arith.constant 0 : i32
    return %arg0, %c0_i32, %c0_i32_0 : i32, i32, i32
  }
}

</mosaic_0001>

<llo_original>
// kernel: tpu_custom_call.1
$region0: #{tpu_custom_call.1}
  #allocation0 [shape = 'u32[]', space=smem, size = 0x4, offset = 0x4, fixed_abs, tag = 'smem constant byte address 0x4 - core index']
  #allocation1 [shape = 'u32[144,128]{1,0:T(1,128)}', space=vmem, size = 0x12000, scoped, tag = 'internal scratch']
  #allocation2 [shape = 'f32[18,18,3]{2,1,0:T(8,128)}', space=vmem, size = 0x36000, scoped, tag = 'scratch operand']
  %s0 = inlined_call_operand.vmem [shape: bf16[2,16,16,3], index: 0, kind: input, shape index: {}]
  %s1 = inlined_call_operand.vmem [shape: bf16[3,9,4], index: 1, kind: input, shape index: {}]
  %s2 = inlined_call_operand.vmem [shape: f32[2,256,4], index: 2, kind: output, shape index: {0}]
  %s3 = inlined_call_operand.hbm [shape: f32[2,1,4], index: 3, kind: output, shape index: {1}]
  %s4 = inlined_call_operand.hbm [shape: f32[2,1,4], index: 4, kind: output, shape index: {2}]
  %5 = xla_tuple %s2, %s3, %s4
  %s6 = sld [smem:[#allocation0]]
  $region57: #{tpu_custom_call.1} parent=0
    _
  %s8 = ssub.s32 1, %s6
  %s9 = scalar_select 0, %s8, %s6
  $region1: #{tpu_custom_call.1} parent=0
    #allocation3 [shape = 'u8[1024]{0}', space=vmem, size = 0x400, scoped, tag = 'output window, operand 1']
    #allocation4 [shape = 's32[2]{0}', space=sflag, size = 0x8, scoped, tag = 'scoped memory for tpu_custom_call.1']
    #allocation5 [shape = 'u8[1024]{0}', space=vmem, size = 0x400, scoped, tag = 'output window, operand 2']
    #allocation6 [shape = 's32[2]{0}', space=sflag, size = 0x8, scoped, tag = 'scoped memory for tpu_custom_call.1']
    %10 = vsyncpa [#allocation4], 0
    %s11 = scalar_lea.sflag [#allocation4], 1
    %12 = vsyncpa %s11, 0
    %13 = vsyncpa [#allocation6], 0
    %s14 = scalar_lea.sflag [#allocation6], 1
    %15 = vsyncpa %s14, 0
    loop: start=0, step=1, limit=4
    $region2: #{tpu_custom_call.1} parent=1 // loop_pre_header
      _
    $region3: #{tpu_custom_call.1} parent=1 // loop_header
      %s17 = sphi 0, %s21
      %p18 = scmp.ge.s32.totalorder %s17, 4
      %s27 = sphi 0, %s29
      %s30 = sphi 0, %s27
      %s31 = sphi 0, %s30
      %s47 = sphi 0, %s31
      %s51 = sphi 0, %s51
      %s53 = sphi 0, %s51
      %s54 = sphi 0, %s53
      %s68 = sphi 0, %s54
      %s74 = sphi 0, %s76
      %s77 = sphi 0, %s74
      %s78 = sphi 0, %s77
      %s94 = sphi 0, %s78
      %s100 = sphi 0, %s102
      %s103 = sphi 0, %s100
      %s104 = sphi 0, %s103
      %s120 = sphi 0, %s104
      %s126 = sphi 0, %s128
      %s129 = sphi 0, %s126
      %s130 = sphi 0, %s129
      %s146 = sphi 0, %s130
    $region4: #{tpu_custom_call.1} parent=1 // loop_header_branch
      %20 = sbr.rel (%p18) target = $region8
    $region5: #{tpu_custom_call.1} parent=1 // loop_body
      %s22 = ssub.s32 %s17, 1
      %s23 = ssub.s32 %s17, 2
      %s24 = sadd.s32 %s17, 1
      %s25 = ssub.s32 %s17, %s24
      %p26 = scmp.eq.s32.totalorder %s25, 0
      %s28 = sadd.s32 %s27, 1
      %s29 = scalar_select %p26, %s27, %s28
      %p32 = pneg %p26
      %p33 = scmp.eq.s32.totalorder %s17, 1
      %p34 = por %p32, %p33
      %p35 = scmp.ne.s32.totalorder %s27, %s30
      %p36 = scmp.eq.s32.totalorder %s17, 0
      %p37 = por %p35, %p36
      %p38 = scmp.ne.s32.totalorder %s27, %s30
      %p39 = scmp.eq.s32.totalorder %s22, 1
      %p40 = por %p38, %p39
      %p41 = scmp.ne.s32.totalorder %s30, %s31
      %p42 = scmp.eq.s32.totalorder %s22, 0
      %p43 = por %p41, %p42
      %p44 = scmp.ne.s32.totalorder %s30, %s31
      %p45 = scmp.eq.s32.totalorder %s23, 1
      %p46 = por %p44, %p45
      %p48 = scmp.ne.s32.totalorder %s31, %s47
      %p49 = scmp.eq.s32.totalorder %s23, 0
      %p50 = por %p48, %p49
      %s52 = sadd.s32 %s51, 1
      %p55 = scmp.eq.s32.totalorder %s17, 1
      %p56 = scmp.ne.s32.totalorder %s51, %s53
      %p57 = scmp.eq.s32.totalorder %s17, 0
      %p58 = por %p56, %p57
      %p59 = scmp.ne.s32.totalorder %s51, %s53
      %p60 = scmp.eq.s32.totalorder %s22, 1
      %p61 = por %p59, %p60
      %p62 = scmp.ne.s32.totalorder %s53, %s54
      %p63 = scmp.eq.s32.totalorder %s22, 0
      %p64 = por %p62, %p63
      %p65 = scmp.ne.s32.totalorder %s53, %s54
      %p66 = scmp.eq.s32.totalorder %s23, 1
      %p67 = por %p65, %p66
      %p69 = scmp.ne.s32.totalorder %s54, %s68
      %p70 = scmp.eq.s32.totalorder %s23, 0
      %p71 = por %p69, %p70
      %s72 = ssub.s32 %s17, %s24
      %p73 = scmp.eq.s32.totalorder %s72, 0
      %s75 = sadd.s32 %s74, 1
      %s76 = scalar_select %p73, %s74, %s75
      %p79 = pneg %p73
      %p80 = scmp.eq.s32.totalorder %s17, 1
      %p81 = por %p79, %p80
      %p82 = scmp.ne.s32.totalorder %s74, %s77
      %p83 = scmp.eq.s32.totalorder %s17, 0
      %p84 = por %p82, %p83
      %p85 = scmp.ne.s32.totalorder %s74, %s77
      %p86 = scmp.eq.s32.totalorder %s22, 1
      %p87 = por %p85, %p86
      %p88 = scmp.ne.s32.totalorder %s77, %s78
      %p89 = scmp.eq.s32.totalorder %s22, 0
      %p90 = por %p88, %p89
      %p91 = scmp.ne.s32.totalorder %s77, %s78
      %p92 = scmp.eq.s32.totalorder %s23, 1
      %p93 = por %p91, %p92
      %p95 = scmp.ne.s32.totalorder %s78, %s94
      %p96 = scmp.eq.s32.totalorder %s23, 0
      %p97 = por %p95, %p96
      %s98 = ssub.s32 %s17, %s24
      %p99 = scmp.eq.s32.totalorder %s98, 0
      %s101 = sadd.s32 %s100, 1
      %s102 = scalar_select %p99, %s100, %s101
      %p105 = pneg %p99
      %p106 = scmp.eq.s32.totalorder %s17, 1
      %p107 = por %p105, %p106
      %p108 = scmp.ne.s32.totalorder %s100, %s103
      %p109 = scmp.eq.s32.totalorder %s17, 0
      %p110 = por %p108, %p109
      %p111 = scmp.ne.s32.totalorder %s100, %s103
      %p112 = scmp.eq.s32.totalorder %s22, 1
      %p113 = por %p111, %p112
      %p114 = scmp.ne.s32.totalorder %s103, %s104
      %p115 = scmp.eq.s32.totalorder %s22, 0
      %p116 = por %p114, %p115
      %p117 = scmp.ne.s32.totalorder %s103, %s104
      %p118 = scmp.eq.s32.totalorder %s23, 1
      %p119 = por %p117, %p118
      %p121 = scmp.ne.s32.totalorder %s104, %s120
      %p122 = scmp.eq.s32.totalorder %s23, 0
      %p123 = por %p121, %p122
      %s124 = ssub.s32 %s17, %s24
      %p125 = scmp.eq.s32.totalorder %s124, 0
      %s127 = sadd.s32 %s126, 1
      %s128 = scalar_select %p125, %s126, %s127
      %p131 = pneg %p125
      %p132 = scmp.eq.s32.totalorder %s17, 1
      %p133 = por %p131, %p132
      %p134 = scmp.ne.s32.totalorder %s126, %s129
      %p135 = scmp.eq.s32.totalorder %s17, 0
      %p136 = por %p134, %p135
      %p137 = scmp.ne.s32.totalorder %s126, %s129
      %p138 = scmp.eq.s32.totalorder %s22, 1
      %p139 = por %p137, %p138
      %p140 = scmp.ne.s32.totalorder %s129, %s130
      %p141 = scmp.eq.s32.totalorder %s22, 0
      %p142 = por %p140, %p141
      %p143 = scmp.ne.s32.totalorder %s129, %s130
      %p144 = scmp.eq.s32.totalorder %s23, 1
      %p145 = por %p143, %p144
      %p147 = scmp.ne.s32.totalorder %s130, %s146
      %p148 = scmp.eq.s32.totalorder %s23, 0
      %p149 = por %p147, %p148
      %p150 = scmp.le.s32.totalorder 1, %s17
      %p151 = scmp.lt.s32.totalorder %s17, 3
      %p152 = pnand %p150, %p151
      %p153 = pneg %p152
      // Predicated region
      $region9: #{tpu_custom_call.1} parent=5 // pred_check
        _
      $region10: #{tpu_custom_call.1} parent=5 // pred_check_branch
        %155 = sbr.rel (%p152) target = $region12
      $region11: #{tpu_custom_call.1} parent=5 // pred_region
        %s156 = ssub.s32 %s17, 1
        // Predicated region
        $region13: #{tpu_custom_call.1} parent=11 // pred_check
          %p157 = pneg %p64
        $region14: #{tpu_custom_call.1} parent=11 // pred_check_branch
          %159 = sbr.rel (%p157) target = $region16
        $region15: #{tpu_custom_call.1} parent=11 // pred_region
          _
        $region16: #{tpu_custom_call.1} parent=11 // pred_fallthru
          _
      $region12: #{tpu_custom_call.1} parent=5 // pred_fallthru
        _
      %p160 = scmp.lt.s32.totalorder %s17, 2
      // Predicated region
      $region17: #{tpu_custom_call.1} parent=5 // pred_check
        %p161 = pneg %p160
      $region18: #{tpu_custom_call.1} parent=5 // pred_check_branch
        %163 = sbr.rel (%p161) target = $region20
      $region19: #{tpu_custom_call.1} parent=5 // pred_region
        // Predicated region
        $region21: #{tpu_custom_call.1} parent=19 // pred_check
          %p164 = pneg %p37
        $region22: #{tpu_custom_call.1} parent=19 // pred_check_branch
          %166 = sbr.rel (%p164) target = $region24
        $region23: #{tpu_custom_call.1} parent=19 // pred_region
          %p167 = scmp.lt.s32.totalorder %s17, 1
          %s168 = scalar_select %p167, %s17, 1
          %s169 = smul.addr %s168, 32
          %s170 = smul.addr %s169, 4
          %s171 = scalar_lea.vmem %s0, %s170
        $region24: #{tpu_custom_call.1} parent=19 // pred_fallthru
          _
      $region20: #{tpu_custom_call.1} parent=5 // pred_fallthru
        _
      %p172 = scmp.le.s32.totalorder 1, %s17
      %p173 = scmp.lt.s32.totalorder %s17, 3
      %p174 = pnand %p172, %p173
      %p175 = pneg %p174
      // Predicated region
      $region25: #{tpu_custom_call.1} parent=5 // pred_check
        _
      $region26: #{tpu_custom_call.1} parent=5 // pred_check_branch
        %177 = sbr.rel (%p174) target = $region28
      $region27: #{tpu_custom_call.1} parent=5 // pred_region
        %s178 = ssub.s32 %s17, 1
        %p179 = scmp.lt.s32.totalorder %s22, 1
        %s180 = scalar_select %p179, %s22, 1
        %s181 = smul.addr %s180, 32
        %s182 = smul.addr %s181, 4
        %s183 = scalar_lea.vmem %s0, %s182
        %p184 = pneg %p43
        %p185 = pneg %p40
        %p186 = pneg %p64
        %p187 = pneg %p61
        %p188 = pneg %p90
        %p189 = pneg %p87
        %p190 = scmp.lt.s32.totalorder %s22, 1
        %s191 = scalar_select %p190, %s22, 1
        %s192 = smul.addr %s191, 32
        %s193 = smul.addr %s192, 8
        %s194 = scalar_lea.vmem %s2, %s193
        %p195 = pneg %p116
        %p196 = pneg %p113
        %s197 = sand.u32 %s103, 1
        %s198 = scalar_lea.sflag [#allocation4], %s197
        %s199 = sand.u32 %s103, 1
        %s200 = scalar_lea.vmem [#allocation3], %s199
        %p201 = pneg %p142
        %p202 = pneg %p139
        %s203 = sand.u32 %s129, 1
        %s204 = scalar_lea.sflag [#allocation6], %s203
        %s205 = sand.u32 %s129, 1
        %s206 = scalar_lea.vmem [#allocation5], %s205
        %p207 = scmp.lt.s32.totalorder %s22, 1
        %s208 = scalar_select %p207, %s22, 1
        %s209 = smul.addr %s208, 32
        %s210 = smul.addr %s209, 4
        %s211 = scalar_lea.vmem %s0, %s210
        %p212 = scmp.lt.s32.totalorder %s22, 1
        %s213 = scalar_select %p212, %s22, 1
        %s214 = smul.addr %s213, 32
        %s215 = smul.addr %s214, 8
        %s216 = scalar_lea.vmem %s2, %s215
        %vm218 = vcmask 23552
        %219 = vst.msk [vmem:[#allocation2] sm:$0xff] %vm218, 0.0
        %220 = vst.msk [vmem:[#allocation2 + $0x8] sm:$0xff] %vm218, 0.0
        %vm221 = vcmask 17408
        %222 = vst.msk [vmem:[#allocation2 + $0x10] sm:$0x3] %vm221, 0.0
        %223 = vst.msk [vmem:[#allocation2 + $0x18] sm:$0xff] %vm218, 0.0
        %224 = vst.msk [vmem:[#allocation2 + $0x20] sm:$0xff] %vm218, 0.0
        %225 = vst.msk [vmem:[#allocation2 + $0x28] sm:$0x3] %vm221, 0.0
        %226 = vst.msk [vmem:[#allocation2 + $0x30] sm:$0xff] %vm218, 0.0
        %227 = vst.msk [vmem:[#allocation2 + $0x38] sm:$0xff] %vm218, 0.0
        %228 = vst.msk [vmem:[#allocation2 + $0x40] sm:$0x3] %vm221, 0.0
        %229 = vst.msk [vmem:[#allocation2 + $0x48] sm:$0xff] %vm218, 0.0
        %230 = vst.msk [vmem:[#allocation2 + $0x50] sm:$0xff] %vm218, 0.0
        %231 = vst.msk [vmem:[#allocation2 + $0x58] sm:$0x3] %vm221, 0.0
        %232 = vst.msk [vmem:[#allocation2 + $0x60] sm:$0xff] %vm218, 0.0
        %233 = vst.msk [vmem:[#allocation2 + $0x68] sm:$0xff] %vm218, 0.0
        %234 = vst.msk [vmem:[#allocation2 + $0x70] sm:$0x3] %vm221, 0.0
        %235 = vst.msk [vmem:[#allocation2 + $0x78] sm:$0xff] %vm218, 0.0
        %236 = vst.msk [vmem:[#allocation2 + $0x80] sm:$0xff] %vm218, 0.0
        %237 = vst.msk [vmem:[#allocation2 + $0x88] sm:$0x3] %vm221, 0.0
        %238 = vst.msk [vmem:[#allocation2 + $0x90] sm:$0xff] %vm218, 0.0
        %239 = vst.msk [vmem:[#allocation2 + $0x98] sm:$0xff] %vm218, 0.0
        %240 = vst.msk [vmem:[#allocation2 + $0xa0] sm:$0x3] %vm221, 0.0
        %241 = vst.msk [vmem:[#allocation2 + $0xa8] sm:$0xff] %vm218, 0.0
        %242 = vst.msk [vmem:[#allocation2 + $0xb0] sm:$0xff] %vm218, 0.0
        %243 = vst.msk [vmem:[#allocation2 + $0xb8] sm:$0x3] %vm221, 0.0
        %244 = vst.msk [vmem:[#allocation2 + $0xc0] sm:$0xff] %vm218, 0.0
        %245 = vst.msk [vmem:[#allocation2 + $0xc8] sm:$0xff] %vm218, 0.0
        %246 = vst.msk [vmem:[#allocation2 + $0xd0] sm:$0x3] %vm221, 0.0
        %247 = vst.msk [vmem:[#allocation2 + $0xd8] sm:$0xff] %vm218, 0.0
        %248 = vst.msk [vmem:[#allocation2 + $0xe0] sm:$0xff] %vm218, 0.0
        %249 = vst.msk [vmem:[#allocation2 + $0xe8] sm:$0x3] %vm221, 0.0
        %250 = vst.msk [vmem:[#allocation2 + $0xf0] sm:$0xff] %vm218, 0.0
        %251 = vst.msk [vmem:[#allocation2 + $0xf8] sm:$0xff] %vm218, 0.0
        %252 = vst.msk [vmem:[#allocation2 + $0x100] sm:$0x3] %vm221, 0.0
        %253 = vst.msk [vmem:[#allocation2 + $0x108] sm:$0xff] %vm218, 0.0
        %254 = vst.msk [vmem:[#allocation2 + $0x110] sm:$0xff] %vm218, 0.0
        %255 = vst.msk [vmem:[#allocation2 + $0x118] sm:$0x3] %vm221, 0.0
        %256 = vst.msk [vmem:[#allocation2 + $0x120] sm:$0xff] %vm218, 0.0
        %257 = vst.msk [vmem:[#allocation2 + $0x128] sm:$0xff] %vm218, 0.0
        %258 = vst.msk [vmem:[#allocation2 + $0x130] sm:$0x3] %vm221, 0.0
        %259 = vst.msk [vmem:[#allocation2 + $0x138] sm:$0xff] %vm218, 0.0
        %260 = vst.msk [vmem:[#allocation2 + $0x140] sm:$0xff] %vm218, 0.0
        %261 = vst.msk [vmem:[#allocation2 + $0x148] sm:$0x3] %vm221, 0.0
        %262 = vst.msk [vmem:[#allocation2 + $0x150] sm:$0xff] %vm218, 0.0
        %263 = vst.msk [vmem:[#allocation2 + $0x158] sm:$0xff] %vm218, 0.0
        %264 = vst.msk [vmem:[#allocation2 + $0x160] sm:$0x3] %vm221, 0.0
        %265 = vst.msk [vmem:[#allocation2 + $0x168] sm:$0xff] %vm218, 0.0
        %266 = vst.msk [vmem:[#allocation2 + $0x170] sm:$0xff] %vm218, 0.0
        %267 = vst.msk [vmem:[#allocation2 + $0x178] sm:$0x3] %vm221, 0.0
        %268 = vst.msk [vmem:[#allocation2 + $0x180] sm:$0xff] %vm218, 0.0
        %269 = vst.msk [vmem:[#allocation2 + $0x188] sm:$0xff] %vm218, 0.0
        %270 = vst.msk [vmem:[#allocation2 + $0x190] sm:$0x3] %vm221, 0.0
        %271 = vst.msk [vmem:[#allocation2 + $0x198] sm:$0xff] %vm218, 0.0
        %272 = vst.msk [vmem:[#allocation2 + $0x1a0] sm:$0xff] %vm218, 0.0
        %273 = vst.msk [vmem:[#allocation2 + $0x1a8] sm:$0x3] %vm221, 0.0
        %v274 = vld [vmem:[%s211] sm:$0xf]
        %v275 = vld [vmem:[%s211 + $0x4] sm:$0xf]
        %v276 = vld [vmem:[%s211 + $0x8] sm:$0xf]
        %v277 = vld [vmem:[%s211 + $0xc] sm:$0xf]
        %v278 = vld [vmem:[%s211 + $0x10] sm:$0xf]
        %v279 = vld [vmem:[%s211 + $0x14] sm:$0xf]
        %v280 = vld [vmem:[%s211 + $0x18] sm:$0xf]
        %v281 = vld [vmem:[%s211 + $0x1c] sm:$0xf]
        %v282 = vld [vmem:[%s211 + $0x20] sm:$0xf]
        %v283 = vld [vmem:[%s211 + $0x24] sm:$0xf]
        %v284 = vld [vmem:[%s211 + $0x28] sm:$0xf]
        %v285 = vld [vmem:[%s211 + $0x2c] sm:$0xf]
        %v286 = vld [vmem:[%s211 + $0x30] sm:$0xf]
        %v287 = vld [vmem:[%s211 + $0x34] sm:$0xf]
        %v288 = vld [vmem:[%s211 + $0x38] sm:$0xf]
        %v289 = vld [vmem:[%s211 + $0x3c] sm:$0xf]
        %v290 = vld [vmem:[%s211 + $0x40] sm:$0xf]
        %v291 = vld [vmem:[%s211 + $0x44] sm:$0xf]
        %v292 = vld [vmem:[%s211 + $0x48] sm:$0xf]
        %v293 = vld [vmem:[%s211 + $0x4c] sm:$0xf]
        %v294 = vld [vmem:[%s211 + $0x50] sm:$0xf]
        %v295 = vld [vmem:[%s211 + $0x54] sm:$0xf]
        %v296 = vld [vmem:[%s211 + $0x58] sm:$0xf]
        %v297 = vld [vmem:[%s211 + $0x5c] sm:$0xf]
        %v298 = vld [vmem:[%s211 + $0x60] sm:$0xf]
        %v299 = vld [vmem:[%s211 + $0x64] sm:$0xf]
        %v300 = vld [vmem:[%s211 + $0x68] sm:$0xf]
        %v301 = vld [vmem:[%s211 + $0x6c] sm:$0xf]
        %v302 = vld [vmem:[%s211 + $0x70] sm:$0xf]
        %v303 = vld [vmem:[%s211 + $0x74] sm:$0xf]
        %v304 = vld [vmem:[%s211 + $0x78] sm:$0xf]
        %v305 = vld [vmem:[%s211 + $0x7c] sm:$0xf]
        %v306 = vunpack.c.l.bf16 %v274
        %v307 = vunpack.c.l.bf16 %v275
        %v308 = vunpack.c.l.bf16 %v276
        %v309 = vunpack.c.l.bf16 %v277
        %v310 = vunpack.c.l.bf16 %v278
        %v311 = vunpack.c.l.bf16 %v279
        %v312 = vunpack.c.l.bf16 %v280
        %v313 = vunpack.c.l.bf16 %v281
        %v314 = vunpack.c.l.bf16 %v282
        %v315 = vunpack.c.l.bf16 %v283
        %v316 = vunpack.c.l.bf16 %v284
        %v317 = vunpack.c.l.bf16 %v285
        %v318 = vunpack.c.l.bf16 %v286
        %v319 = vunpack.c.l.bf16 %v287
        %v320 = vunpack.c.l.bf16 %v288
        %v321 = vunpack.c.l.bf16 %v289
        %v322 = vunpack.c.l.bf16 %v290
        %v323 = vunpack.c.l.bf16 %v291
        %v324 = vunpack.c.l.bf16 %v292
        %v325 = vunpack.c.l.bf16 %v293
        %v326 = vunpack.c.l.bf16 %v294
        %v327 = vunpack.c.l.bf16 %v295
        %v328 = vunpack.c.l.bf16 %v296
        %v329 = vunpack.c.l.bf16 %v297
        %v330 = vunpack.c.l.bf16 %v298
        %v331 = vunpack.c.l.bf16 %v299
        %v332 = vunpack.c.l.bf16 %v300
        %v333 = vunpack.c.l.bf16 %v301
        %v334 = vunpack.c.l.bf16 %v302
        %v335 = vunpack.c.l.bf16 %v303
        %v336 = vunpack.c.l.bf16 %v304
        %v337 = vunpack.c.l.bf16 %v305
        %s338 = scalar_lea.vmem [#allocation2], 24
        %339 = vst.msk [vmem:[%s338 + $0x1] sm:$0xff] %vm218, %v306
        %340 = vst.msk [vmem:[%s338 + $0x9] sm:$0xff] %vm218, %v307
        %341 = vst.msk [vmem:[%s338 + $0x19] sm:$0xff] %vm218, %v308
        %342 = vst.msk [vmem:[%s338 + $0x21] sm:$0xff] %vm218, %v309
        %343 = vst.msk [vmem:[%s338 + $0x31] sm:$0xff] %vm218, %v310
        %344 = vst.msk [vmem:[%s338 + $0x39] sm:$0xff] %vm218, %v311
        %345 = vst.msk [vmem:[%s338 + $0x49] sm:$0xff] %vm218, %v312
        %346 = vst.msk [vmem:[%s338 + $0x51] sm:$0xff] %vm218, %v313
        %347 = vst.msk [vmem:[%s338 + $0x61] sm:$0xff] %vm218, %v314
        %348 = vst.msk [vmem:[%s338 + $0x69] sm:$0xff] %vm218, %v315
        %349 = vst.msk [vmem:[%s338 + $0x79] sm:$0xff] %vm218, %v316
        %350 = vst.msk [vmem:[%s338 + $0x81] sm:$0xff] %vm218, %v317
        %351 = vst.msk [vmem:[%s338 + $0x91] sm:$0xff] %vm218, %v318
        %352 = vst.msk [vmem:[%s338 + $0x99] sm:$0xff] %vm218, %v319
        %353 = vst.msk [vmem:[%s338 + $0xa9] sm:$0xff] %vm218, %v320
        %354 = vst.msk [vmem:[%s338 + $0xb1] sm:$0xff] %vm218, %v321
        %355 = vst.msk [vmem:[%s338 + $0xc1] sm:$0xff] %vm218, %v322
        %356 = vst.msk [vmem:[%s338 + $0xc9] sm:$0xff] %vm218, %v323
        %357 = vst.msk [vmem:[%s338 + $0xd9] sm:$0xff] %vm218, %v324
        %358 = vst.msk [vmem:[%s338 + $0xe1] sm:$0xff] %vm218, %v325
        %359 = vst.msk [vmem:[%s338 + $0xf1] sm:$0xff] %vm218, %v326
        %360 = vst.msk [vmem:[%s338 + $0xf9] sm:$0xff] %vm218, %v327
        %361 = vst.msk [vmem:[%s338 + $0x109] sm:$0xff] %vm218, %v328
        %362 = vst.msk [vmem:[%s338 + $0x111] sm:$0xff] %vm218, %v329
        %363 = vst.msk [vmem:[%s338 + $0x121] sm:$0xff] %vm218, %v330
        %364 = vst.msk [vmem:[%s338 + $0x129] sm:$0xff] %vm218, %v331
        %365 = vst.msk [vmem:[%s338 + $0x139] sm:$0xff] %vm218, %v332
        %366 = vst.msk [vmem:[%s338 + $0x141] sm:$0xff] %vm218, %v333
        %367 = vst.msk [vmem:[%s338 + $0x151] sm:$0xff] %vm218, %v334
        %368 = vst.msk [vmem:[%s338 + $0x159] sm:$0xff] %vm218, %v335
        %369 = vst.msk [vmem:[%s338 + $0x169] sm:$0xff] %vm218, %v336
        %370 = vst.msk [vmem:[%s338 + $0x171] sm:$0xff] %vm218, %v337
        %v371 = vld [vmem:[#allocation2] sm:$0xff]
        %v372 = vld [vmem:[#allocation2 + $0x8] sm:$0xff]
        %v373 = vld [vmem:[#allocation2 + $0x18] sm:$0xff]
        %v374 = vld [vmem:[#allocation2 + $0x20] sm:$0xff]
        %v375 = vld [vmem:[#allocation2 + $0x30] sm:$0xff]
        %v376 = vld [vmem:[#allocation2 + $0x38] sm:$0xff]
        %v377 = vld [vmem:[#allocation2 + $0x48] sm:$0xff]
        %v378 = vld [vmem:[#allocation2 + $0x50] sm:$0xff]
        %v379 = vld [vmem:[#allocation2 + $0x60] sm:$0xff]
        %v380 = vld [vmem:[#allocation2 + $0x68] sm:$0xff]
        %v381 = vld [vmem:[#allocation2 + $0x78] sm:$0xff]
        %v382 = vld [vmem:[#allocation2 + $0x80] sm:$0xff]
        %v383 = vld [vmem:[#allocation2 + $0x90] sm:$0xff]
        %v384 = vld [vmem:[#allocation2 + $0x98] sm:$0xff]
        %v385 = vld [vmem:[#allocation2 + $0xa8] sm:$0xff]
        %v386 = vld [vmem:[#allocation2 + $0xb0] sm:$0xff]
        %v387 = vld [vmem:[#allocation2 + $0xc0] sm:$0xff]
        %v388 = vld [vmem:[#allocation2 + $0xc8] sm:$0xff]
        %v389 = vld [vmem:[#allocation2 + $0xd8] sm:$0xff]
        %v390 = vld [vmem:[#allocation2 + $0xe0] sm:$0xff]
        %v391 = vld [vmem:[#allocation2 + $0xf0] sm:$0xff]
        %v392 = vld [vmem:[#allocation2 + $0xf8] sm:$0xff]
        %v393 = vld [vmem:[#allocation2 + $0x108] sm:$0xff]
        %v394 = vld [vmem:[#allocation2 + $0x110] sm:$0xff]
        %v395 = vld [vmem:[#allocation2 + $0x120] sm:$0xff]
        %v396 = vld [vmem:[#allocation2 + $0x128] sm:$0xff]
        %v397 = vld [vmem:[#allocation2 + $0x138] sm:$0xff]
        %v398 = vld [vmem:[#allocation2 + $0x140] sm:$0xff]
        %v399 = vld [vmem:[#allocation2 + $0x150] sm:$0xff]
        %v400 = vld [vmem:[#allocation2 + $0x158] sm:$0xff]
        %v401 = vld [vmem:[#allocation2 + $0x168] sm:$0xff]
        %v402 = vld [vmem:[#allocation2 + $0x170] sm:$0xff]
        %v403 = vld [vmem:[#allocation2 + $0x1] sm:$0xff]
        %v404 = vld [vmem:[#allocation2 + $0x9] sm:$0xff]
        %v405 = vld [vmem:[#allocation2 + $0x19] sm:$0xff]
        %v406 = vld [vmem:[#allocation2 + $0x21] sm:$0xff]
        %v407 = vld [vmem:[#allocation2 + $0x31] sm:$0xff]
        %v408 = vld [vmem:[#allocation2 + $0x39] sm:$0xff]
        %v409 = vld [vmem:[#allocation2 + $0x49] sm:$0xff]
        %v410 = vld [vmem:[#allocation2 + $0x51] sm:$0xff]
        %v411 = vld [vmem:[#allocation2 + $0x61] sm:$0xff]
        %v412 = vld [vmem:[#allocation2 + $0x69] sm:$0xff]
        %v413 = vld [vmem:[#allocation2 + $0x79] sm:$0xff]
        %v414 = vld [vmem:[#allocation2 + $0x81] sm:$0xff]
        %v415 = vld [vmem:[#allocation2 + $0x91] sm:$0xff]
        %v416 = vld [vmem:[#allocation2 + $0x99] sm:$0xff]
        %v417 = vld [vmem:[#allocation2 + $0xa9] sm:$0xff]
        %v418 = vld [vmem:[#allocation2 + $0xb1] sm:$0xff]
        %v419 = vld [vmem:[#allocation2 + $0xc1] sm:$0xff]
        %v420 = vld [vmem:[#allocation2 + $0xc9] sm:$0xff]
        %v421 = vld [vmem:[#allocation2 + $0xd9] sm:$0xff]
        %v422 = vld [vmem:[#allocation2 + $0xe1] sm:$0xff]
        %v423 = vld [vmem:[#allocation2 + $0xf1] sm:$0xff]
        %v424 = vld [vmem:[#allocation2 + $0xf9] sm:$0xff]
        %v425 = vld [vmem:[#allocation2 + $0x109] sm:$0xff]
        %v426 = vld [vmem:[#allocation2 + $0x111] sm:$0xff]
        %v427 = vld [vmem:[#allocation2 + $0x121] sm:$0xff]
        %v428 = vld [vmem:[#allocation2 + $0x129] sm:$0xff]
        %v429 = vld [vmem:[#allocation2 + $0x139] sm:$0xff]
        %v430 = vld [vmem:[#allocation2 + $0x141] sm:$0xff]
        %v431 = vld [vmem:[#allocation2 + $0x151] sm:$0xff]
        %v432 = vld [vmem:[#allocation2 + $0x159] sm:$0xff]
        %v433 = vld [vmem:[#allocation2 + $0x169] sm:$0xff]
        %v434 = vld [vmem:[#allocation2 + $0x171] sm:$0xff]
        %v435 = vld [vmem:[#allocation2 + $0x2] sm:$0xff]
        %v436 = vld [vmem:[#allocation2 + $0xa] sm:$0xff]
        %v437 = vld [vmem:[#allocation2 + $0x1a] sm:$0xff]
        %v438 = vld [vmem:[#allocation2 + $0x22] sm:$0xff]
        %v439 = vld [vmem:[#allocation2 + $0x32] sm:$0xff]
        %v440 = vld [vmem:[#allocation2 + $0x3a] sm:$0xff]
        %v441 = vld [vmem:[#allocation2 + $0x4a] sm:$0xff]
        %v442 = vld [vmem:[#allocation2 + $0x52] sm:$0xff]
        %v443 = vld [vmem:[#allocation2 + $0x62] sm:$0xff]
        %v444 = vld [vmem:[#allocation2 + $0x6a] sm:$0xff]
        %v445 = vld [vmem:[#allocation2 + $0x7a] sm:$0xff]
        %v446 = vld [vmem:[#allocation2 + $0x82] sm:$0xff]
        %v447 = vld [vmem:[#allocation2 + $0x92] sm:$0xff]
        %v448 = vld [vmem:[#allocation2 + $0x9a] sm:$0xff]
        %v449 = vld [vmem:[#allocation2 + $0xaa] sm:$0xff]
        %v450 = vld [vmem:[#allocation2 + $0xb2] sm:$0xff]
        %v451 = vld [vmem:[#allocation2 + $0xc2] sm:$0xff]
        %v452 = vld [vmem:[#allocation2 + $0xca] sm:$0xff]
        %v453 = vld [vmem:[#allocation2 + $0xda] sm:$0xff]
        %v454 = vld [vmem:[#allocation2 + $0xe2] sm:$0xff]
        %v455 = vld [vmem:[#allocation2 + $0xf2] sm:$0xff]
        %v456 = vld [vmem:[#allocation2 + $0xfa] sm:$0xff]
        %v457 = vld [vmem:[#allocation2 + $0x10a] sm:$0xff]
        %v458 = vld [vmem:[#allocation2 + $0x112] sm:$0xff]
        %v459 = vld [vmem:[#allocation2 + $0x122] sm:$0xff]
        %v460 = vld [vmem:[#allocation2 + $0x12a] sm:$0xff]
        %v461 = vld [vmem:[#allocation2 + $0x13a] sm:$0xff]
        %v462 = vld [vmem:[#allocation2 + $0x142] sm:$0xff]
        %v463 = vld [vmem:[#allocation2 + $0x152] sm:$0xff]
        %v464 = vld [vmem:[#allocation2 + $0x15a] sm:$0xff]
        %v465 = vld [vmem:[#allocation2 + $0x16a] sm:$0xff]
        %v466 = vld [vmem:[#allocation2 + $0x172] sm:$0xff]
        %499 = vrot.lane.b32.xlu0 %v403, 3
        %v500 = vpop.permute.xlu0 %499
        %501 = vrot.lane.b32.xlu0 %v404, 3
        %v502 = vpop.permute.xlu0 %501
        %503 = vrot.lane.b32.xlu0 %v405, 3
        %v504 = vpop.permute.xlu0 %503
        %505 = vrot.lane.b32.xlu0 %v406, 3
        %v506 = vpop.permute.xlu0 %505
        %507 = vrot.lane.b32.xlu0 %v407, 3
        %v508 = vpop.permute.xlu0 %507
        %509 = vrot.lane.b32.xlu0 %v408, 3
        %v510 = vpop.permute.xlu0 %509
        %511 = vrot.lane.b32.xlu0 %v409, 3
        %v512 = vpop.permute.xlu0 %511
        %513 = vrot.lane.b32.xlu0 %v410, 3
        %v514 = vpop.permute.xlu0 %513
        %515 = vrot.lane.b32.xlu0 %v411, 3
        %v516 = vpop.permute.xlu0 %515
        %517 = vrot.lane.b32.xlu0 %v412, 3
        %v518 = vpop.permute.xlu0 %517
        %519 = vrot.lane.b32.xlu0 %v413, 3
        %v520 = vpop.permute.xlu0 %519
        %521 = vrot.lane.b32.xlu0 %v414, 3
        %v522 = vpop.permute.xlu0 %521
        %523 = vrot.lane.b32.xlu0 %v415, 3
        %v524 = vpop.permute.xlu0 %523
        %525 = vrot.lane.b32.xlu0 %v416, 3
        %v526 = vpop.permute.xlu0 %525
        %527 = vrot.lane.b32.xlu0 %v417, 3
        %v528 = vpop.permute.xlu0 %527
        %529 = vrot.lane.b32.xlu0 %v418, 3
        %v530 = vpop.permute.xlu0 %529
        %531 = vrot.lane.b32.xlu0 %v419, 3
        %v532 = vpop.permute.xlu0 %531
        %533 = vrot.lane.b32.xlu0 %v420, 3
        %v534 = vpop.permute.xlu0 %533
        %535 = vrot.lane.b32.xlu0 %v421, 3
        %v536 = vpop.permute.xlu0 %535
        %537 = vrot.lane.b32.xlu0 %v422, 3
        %v538 = vpop.permute.xlu0 %537
        %539 = vrot.lane.b32.xlu0 %v423, 3
        %v540 = vpop.permute.xlu0 %539
        %541 = vrot.lane.b32.xlu0 %v424, 3
        %v542 = vpop.permute.xlu0 %541
        %543 = vrot.lane.b32.xlu0 %v425, 3
        %v544 = vpop.permute.xlu0 %543
        %545 = vrot.lane.b32.xlu0 %v426, 3
        %v546 = vpop.permute.xlu0 %545
        %547 = vrot.lane.b32.xlu0 %v427, 3
        %v548 = vpop.permute.xlu0 %547
        %549 = vrot.lane.b32.xlu0 %v428, 3
        %v550 = vpop.permute.xlu0 %549
        %551 = vrot.lane.b32.xlu0 %v429, 3
        %v552 = vpop.permute.xlu0 %551
        %553 = vrot.lane.b32.xlu0 %v430, 3
        %v554 = vpop.permute.xlu0 %553
        %555 = vrot.lane.b32.xlu0 %v431, 3
        %v556 = vpop.permute.xlu0 %555
        %557 = vrot.lane.b32.xlu0 %v432, 3
        %v558 = vpop.permute.xlu0 %557
        %559 = vrot.lane.b32.xlu0 %v433, 3
        %v560 = vpop.permute.xlu0 %559
        %561 = vrot.lane.b32.xlu0 %v434, 3
        %v562 = vpop.permute.xlu0 %561
        %627 = vrot.lane.b32.xlu0 %v435, 6
        %v628 = vpop.permute.xlu0 %627
        %629 = vrot.lane.b32.xlu0 %v436, 6
        %v630 = vpop.permute.xlu0 %629
        %631 = vrot.lane.b32.xlu0 %v437, 6
        %v632 = vpop.permute.xlu0 %631
        %633 = vrot.lane.b32.xlu0 %v438, 6
        %v634 = vpop.permute.xlu0 %633
        %635 = vrot.lane.b32.xlu0 %v439, 6
        %v636 = vpop.permute.xlu0 %635
        %637 = vrot.lane.b32.xlu0 %v440, 6
        %v638 = vpop.permute.xlu0 %637
        %639 = vrot.lane.b32.xlu0 %v441, 6
        %v640 = vpop.permute.xlu0 %639
        %641 = vrot.lane.b32.xlu0 %v442, 6
        %v642 = vpop.permute.xlu0 %641
        %643 = vrot.lane.b32.xlu0 %v443, 6
        %v644 = vpop.permute.xlu0 %643
        %645 = vrot.lane.b32.xlu0 %v444, 6
        %v646 = vpop.permute.xlu0 %645
        %647 = vrot.lane.b32.xlu0 %v445, 6
        %v648 = vpop.permute.xlu0 %647
        %649 = vrot.lane.b32.xlu0 %v446, 6
        %v650 = vpop.permute.xlu0 %649
        %651 = vrot.lane.b32.xlu0 %v447, 6
        %v652 = vpop.permute.xlu0 %651
        %653 = vrot.lane.b32.xlu0 %v448, 6
        %v654 = vpop.permute.xlu0 %653
        %655 = vrot.lane.b32.xlu0 %v449, 6
        %v656 = vpop.permute.xlu0 %655
        %657 = vrot.lane.b32.xlu0 %v450, 6
        %v658 = vpop.permute.xlu0 %657
        %659 = vrot.lane.b32.xlu0 %v451, 6
        %v660 = vpop.permute.xlu0 %659
        %661 = vrot.lane.b32.xlu0 %v452, 6
        %v662 = vpop.permute.xlu0 %661
        %663 = vrot.lane.b32.xlu0 %v453, 6
        %v664 = vpop.permute.xlu0 %663
        %665 = vrot.lane.b32.xlu0 %v454, 6
        %v666 = vpop.permute.xlu0 %665
        %667 = vrot.lane.b32.xlu0 %v455, 6
        %v668 = vpop.permute.xlu0 %667
        %669 = vrot.lane.b32.xlu0 %v456, 6
        %v670 = vpop.permute.xlu0 %669
        %671 = vrot.lane.b32.xlu0 %v457, 6
        %v672 = vpop.permute.xlu0 %671
        %673 = vrot.lane.b32.xlu0 %v458, 6
        %v674 = vpop.permute.xlu0 %673
        %675 = vrot.lane.b32.xlu0 %v459, 6
        %v676 = vpop.permute.xlu0 %675
        %677 = vrot.lane.b32.xlu0 %v460, 6
        %v678 = vpop.permute.xlu0 %677
        %679 = vrot.lane.b32.xlu0 %v461, 6
        %v680 = vpop.permute.xlu0 %679
        %681 = vrot.lane.b32.xlu0 %v462, 6
        %v682 = vpop.permute.xlu0 %681
        %683 = vrot.lane.b32.xlu0 %v463, 6
        %v684 = vpop.permute.xlu0 %683
        %685 = vrot.lane.b32.xlu0 %v464, 6
        %v686 = vpop.permute.xlu0 %685
        %687 = vrot.lane.b32.xlu0 %v465, 6
        %v688 = vpop.permute.xlu0 %687
        %689 = vrot.lane.b32.xlu0 %v466, 6
        %v690 = vpop.permute.xlu0 %689
        %v723 = vsel %vm218, %v371, %v500
        %v724 = vsel %vm218, %v372, %v502
        %v725 = vsel %vm218, %v373, %v504
        %v726 = vsel %vm218, %v374, %v506
        %v727 = vsel %vm218, %v375, %v508
        %v728 = vsel %vm218, %v376, %v510
        %v729 = vsel %vm218, %v377, %v512
        %v730 = vsel %vm218, %v378, %v514
        %v731 = vsel %vm218, %v379, %v516
        %v732 = vsel %vm218, %v380, %v518
        %v733 = vsel %vm218, %v381, %v520
        %v734 = vsel %vm218, %v382, %v522
        %v735 = vsel %vm218, %v383, %v524
        %v736 = vsel %vm218, %v384, %v526
        %v737 = vsel %vm218, %v385, %v528
        %v738 = vsel %vm218, %v386, %v530
        %v739 = vsel %vm218, %v387, %v532
        %v740 = vsel %vm218, %v388, %v534
        %v741 = vsel %vm218, %v389, %v536
        %v742 = vsel %vm218, %v390, %v538
        %v743 = vsel %vm218, %v391, %v540
        %v744 = vsel %vm218, %v392, %v542
        %v745 = vsel %vm218, %v393, %v544
        %v746 = vsel %vm218, %v394, %v546
        %v747 = vsel %vm218, %v395, %v548
        %v748 = vsel %vm218, %v396, %v550
        %v749 = vsel %vm218, %v397, %v552
        %v750 = vsel %vm218, %v398, %v554
        %v751 = vsel %vm218, %v399, %v556
        %v752 = vsel %vm218, %v400, %v558
        %v753 = vsel %vm218, %v401, %v560
        %v754 = vsel %vm218, %v402, %v562
        %vm755 = vcmask 48128
        %v756 = vsel %vm755, %v723, %v628
        %v757 = vsel %vm755, %v724, %v630
        %v758 = vsel %vm755, %v725, %v632
        %v759 = vsel %vm755, %v726, %v634
        %v760 = vsel %vm755, %v727, %v636
        %v761 = vsel %vm755, %v728, %v638
        %v762 = vsel %vm755, %v729, %v640
        %v763 = vsel %vm755, %v730, %v642
        %v764 = vsel %vm755, %v731, %v644
        %v765 = vsel %vm755, %v732, %v646
        %v766 = vsel %vm755, %v733, %v648
        %v767 = vsel %vm755, %v734, %v650
        %v768 = vsel %vm755, %v735, %v652
        %v769 = vsel %vm755, %v736, %v654
        %v770 = vsel %vm755, %v737, %v656
        %v771 = vsel %vm755, %v738, %v658
        %v772 = vsel %vm755, %v739, %v660
        %v773 = vsel %vm755, %v740, %v662
        %v774 = vsel %vm755, %v741, %v664
        %v775 = vsel %vm755, %v742, %v666
        %v776 = vsel %vm755, %v743, %v668
        %v777 = vsel %vm755, %v744, %v670
        %v778 = vsel %vm755, %v745, %v672
        %v779 = vsel %vm755, %v746, %v674
        %v780 = vsel %vm755, %v747, %v676
        %v781 = vsel %vm755, %v748, %v678
        %v782 = vsel %vm755, %v749, %v680
        %v783 = vsel %vm755, %v750, %v682
        %v784 = vsel %vm755, %v751, %v684
        %v785 = vsel %vm755, %v752, %v686
        %v786 = vsel %vm755, %v753, %v688
        %v787 = vsel %vm755, %v754, %v690
        %v788 = vpack.c.bf16 %v757, %v756
        %v789 = vpack.c.bf16 %v759, %v758
        %v790 = vpack.c.bf16 %v761, %v760
        %v791 = vpack.c.bf16 %v763, %v762
        %v792 = vpack.c.bf16 %v765, %v764
        %v793 = vpack.c.bf16 %v767, %v766
        %v794 = vpack.c.bf16 %v769, %v768
        %v795 = vpack.c.bf16 %v771, %v770
        %v796 = vpack.c.bf16 %v773, %v772
        %v797 = vpack.c.bf16 %v775, %v774
        %v798 = vpack.c.bf16 %v777, %v776
        %v799 = vpack.c.bf16 %v779, %v778
        %v800 = vpack.c.bf16 %v781, %v780
        %v801 = vpack.c.bf16 %v783, %v782
        %v802 = vpack.c.bf16 %v785, %v784
        %v803 = vpack.c.bf16 %v787, %v786
        %v804 = vld [vmem:[%s1] sm:$0xf]
        %v805 = vld [vmem:[%s1 + $0x4] sm:$0x1]
        %v808 = vunpack.c.l.b16 %v804
        %v809 = vunpack.c.l.b16 %v805
        %v810 = vpack.c.b16 %v809, %v808
        %vm811 = vcmask 72704
        %v813 = vsel %vm811, %v788, 0
        %v816 = vsel %vm811, %v789, 0
        %v819 = vsel %vm811, %v790, 0
        %v822 = vsel %vm811, %v791, 0
        %v825 = vsel %vm811, %v792, 0
        %v828 = vsel %vm811, %v793, 0
        %v831 = vsel %vm811, %v794, 0
        %v834 = vsel %vm811, %v795, 0
        %v837 = vsel %vm811, %v796, 0
        %v840 = vsel %vm811, %v797, 0
        %v843 = vsel %vm811, %v798, 0
        %v846 = vsel %vm811, %v799, 0
        %v849 = vsel %vm811, %v800, 0
        %v852 = vsel %vm811, %v801, 0
        %v855 = vsel %vm811, %v802, 0
        %v858 = vsel %vm811, %v803, 0
        %vm860 = vcmask 1043456
        %vm861 = vcmask 1044480
        %v862 = vsel %vm860, 4294967295, 65535
        %v863 = vsel %vm861, %v862, 0
        %v865 = vand.u32 %v810, %v863
        %867 = vmatprep.subr.bf16.mxu0 0
        %868 = vmatpush1.bf16.msra.mxu0 0
        %869 = vmatprep.subr.bf16.mxu0 0
        %870 = vmatpush1.bf16.msra.mxu0 0
        %871 = vmatprep.subr.bf16.mxu0 0
        %872 = vmatpush1.bf16.msra.mxu0 0
        %873 = vmatprep.subr.bf16.mxu0 0
        %874 = vmatpush1.bf16.msra.mxu0 0
        %875 = vmatprep.subr.bf16.mxu0 0
        %876 = vmatpush1.bf16.msra.mxu0 0
        %877 = vmatprep.subr.bf16.mxu0 0
        %878 = vmatpush1.bf16.msra.mxu0 0
        %879 = vmatprep.subr.bf16.mxu0 0
        %880 = vmatpush1.bf16.msra.mxu0 0
        %881 = vmatprep.subr.bf16.mxu0 0
        %882 = vmatpush1.bf16.msra.mxu0 %v865
        %883 = vmatprep.subr.bf16.mxu0 0
        %884 = vmatpush2.bf16.msra.mxu0 0
        %885 = vmatprep.subr.bf16.mxu0 0
        %886 = vmatpush2.bf16.msra.mxu0 0
        %887 = vmatprep.subr.bf16.mxu0 0
        %888 = vmatpush2.bf16.msra.mxu0 0
        %889 = vmatprep.subr.bf16.mxu0 0
        %890 = vmatpush2.bf16.msra.mxu0 0
        %891 = vmatprep.subr.bf16.mxu0 0
        %892 = vmatpush2.bf16.msra.mxu0 0
        %893 = vmatprep.subr.bf16.mxu0 0
        %894 = vmatpush2.bf16.msra.mxu0 0
        %895 = vmatprep.subr.bf16.mxu0 0
        %896 = vmatpush2.bf16.msra.mxu0 0
        %897 = vmatprep.subr.bf16.mxu0 0
        %898 = vmatpush2.bf16.msra.mxu0 0
        %899 = vmatprep.mubr.bf16.mxu0 0
        %900 = vmatmul.mubr.bf16.gmra.mxu0 %v813
        %v901 = vpop.f32.mrf.mxu0
        %v902 = vadd.f32 0.0, %v901
        %v903 = vpop.f32.mrf.mxu0
        %v904 = vpop.f32.mrf.mxu0
        %v905 = vadd.f32 0.0, %v904
        %v906 = vpop.f32.mrf.mxu0
        %907 = vmatprep.mubr.bf16.mxu0 0
        %908 = vmatmul.mubr.bf16.gmra.mxu0 %v816
        %v909 = vpop.f32.mrf.mxu0
        %v910 = vadd.f32 0.0, %v909
        %v911 = vpop.f32.mrf.mxu0
        %v912 = vpop.f32.mrf.mxu0
        %v913 = vadd.f32 0.0, %v912
        %v914 = vpop.f32.mrf.mxu0
        %915 = vmatprep.mubr.bf16.mxu0 0
        %916 = vmatmul.mubr.bf16.gmra.mxu0 %v819
        %v917 = vpop.f32.mrf.mxu0
        %v918 = vadd.f32 0.0, %v917
        %v919 = vpop.f32.mrf.mxu0
        %v920 = vpop.f32.mrf.mxu0
        %v921 = vadd.f32 0.0, %v920
        %v922 = vpop.f32.mrf.mxu0
        %923 = vmatprep.mubr.bf16.mxu0 0
        %924 = vmatmul.mubr.bf16.gmra.mxu0 %v822
        %v925 = vpop.f32.mrf.mxu0
        %v926 = vadd.f32 0.0, %v925
        %v927 = vpop.f32.mrf.mxu0
        %v928 = vpop.f32.mrf.mxu0
        %v929 = vadd.f32 0.0, %v928
        %v930 = vpop.f32.mrf.mxu0
        %931 = vmatprep.mubr.bf16.mxu0 0
        %932 = vmatmul.mubr.bf16.gmra.mxu0 %v825
        %v933 = vpop.f32.mrf.mxu0
        %v934 = vadd.f32 0.0, %v933
        %v935 = vpop.f32.mrf.mxu0
        %v936 = vpop.f32.mrf.mxu0
        %v937 = vadd.f32 0.0, %v936
        %v938 = vpop.f32.mrf.mxu0
        %939 = vmatprep.mubr.bf16.mxu0 0
        %940 = vmatmul.mubr.bf16.gmra.mxu0 %v828
        %v941 = vpop.f32.mrf.mxu0
        %v942 = vadd.f32 0.0, %v941
        %v943 = vpop.f32.mrf.mxu0
        %v944 = vpop.f32.mrf.mxu0
        %v945 = vadd.f32 0.0, %v944
        %v946 = vpop.f32.mrf.mxu0
        %947 = vmatprep.mubr.bf16.mxu0 0
        %948 = vmatmul.mubr.bf16.gmra.mxu0 %v831
        %v949 = vpop.f32.mrf.mxu0
        %v950 = vadd.f32 0.0, %v949
        %v951 = vpop.f32.mrf.mxu0
        %v952 = vpop.f32.mrf.mxu0
        %v953 = vadd.f32 0.0, %v952
        %v954 = vpop.f32.mrf.mxu0
        %955 = vmatprep.mubr.bf16.mxu0 0
        %956 = vmatmul.mubr.bf16.gmra.mxu0 %v834
        %v957 = vpop.f32.mrf.mxu0
        %v958 = vadd.f32 0.0, %v957
        %v959 = vpop.f32.mrf.mxu0
        %v960 = vpop.f32.mrf.mxu0
        %v961 = vadd.f32 0.0, %v960
        %v962 = vpop.f32.mrf.mxu0
        %963 = vmatprep.mubr.bf16.mxu0 0
        %964 = vmatmul.mubr.bf16.gmra.mxu0 %v837
        %v965 = vpop.f32.mrf.mxu0
        %v966 = vadd.f32 0.0, %v965
        %v967 = vpop.f32.mrf.mxu0
        %v968 = vpop.f32.mrf.mxu0
        %v969 = vadd.f32 0.0, %v968
        %v970 = vpop.f32.mrf.mxu0
        %971 = vmatprep.mubr.bf16.mxu0 0
        %972 = vmatmul.mubr.bf16.gmra.mxu0 %v840
        %v973 = vpop.f32.mrf.mxu0
        %v974 = vadd.f32 0.0, %v973
        %v975 = vpop.f32.mrf.mxu0
        %v976 = vpop.f32.mrf.mxu0
        %v977 = vadd.f32 0.0, %v976
        %v978 = vpop.f32.mrf.mxu0
        %979 = vmatprep.mubr.bf16.mxu0 0
        %980 = vmatmul.mubr.bf16.gmra.mxu0 %v843
        %v981 = vpop.f32.mrf.mxu0
        %v982 = vadd.f32 0.0, %v981
        %v983 = vpop.f32.mrf.mxu0
        %v984 = vpop.f32.mrf.mxu0
        %v985 = vadd.f32 0.0, %v984
        %v986 = vpop.f32.mrf.mxu0
        %987 = vmatprep.mubr.bf16.mxu0 0
        %988 = vmatmul.mubr.bf16.gmra.mxu0 %v846
        %v989 = vpop.f32.mrf.mxu0
        %v990 = vadd.f32 0.0, %v989
        %v991 = vpop.f32.mrf.mxu0
        %v992 = vpop.f32.mrf.mxu0
        %v993 = vadd.f32 0.0, %v992
        %v994 = vpop.f32.mrf.mxu0
        %995 = vmatprep.mubr.bf16.mxu0 0
        %996 = vmatmul.mubr.bf16.gmra.mxu0 %v849
        %v997 = vpop.f32.mrf.mxu0
        %v998 = vadd.f32 0.0, %v997
        %v999 = vpop.f32.mrf.mxu0
        %v1000 = vpop.f32.mrf.mxu0
        %v1001 = vadd.f32 0.0, %v1000
        %v1002 = vpop.f32.mrf.mxu0
        %1003 = vmatprep.mubr.bf16.mxu0 0
        %1004 = vmatmul.mubr.bf16.gmra.mxu0 %v852
        %v1005 = vpop.f32.mrf.mxu0
        %v1006 = vadd.f32 0.0, %v1005
        %v1007 = vpop.f32.mrf.mxu0
        %v1008 = vpop.f32.mrf.mxu0
        %v1009 = vadd.f32 0.0, %v1008
        %v1010 = vpop.f32.mrf.mxu0
        %1011 = vmatprep.mubr.bf16.mxu0 0
        %1012 = vmatmul.mubr.bf16.gmra.mxu0 %v855
        %v1013 = vpop.f32.mrf.mxu0
        %v1014 = vadd.f32 0.0, %v1013
        %v1015 = vpop.f32.mrf.mxu0
        %v1016 = vpop.f32.mrf.mxu0
        %v1017 = vadd.f32 0.0, %v1016
        %v1018 = vpop.f32.mrf.mxu0
        %1019 = vmatprep.mubr.bf16.mxu0 0
        %1020 = vmatmul.mubr.bf16.gmra.mxu0 %v858
        %v1021 = vpop.f32.mrf.mxu0
        %v1022 = vadd.f32 0.0, %v1021
        %v1023 = vpop.f32.mrf.mxu0
        %v1024 = vpop.f32.mrf.mxu0
        %v1025 = vadd.f32 0.0, %v1024
        %v1026 = vpop.f32.mrf.mxu0
        %1027 = vdwg.mxu0
        %vm1028 = vcmask 31744
        %1029 = vst.msk [vmem:[%s216] sm:$0xff] %vm1028, %v902
        %1030 = vst.msk [vmem:[%s216 + $0x8] sm:$0xff] %vm1028, %v905
        %1031 = vst.msk [vmem:[%s216 + $0x10] sm:$0xff] %vm1028, %v910
        %1032 = vst.msk [vmem:[%s216 + $0x18] sm:$0xff] %vm1028, %v913
        %1033 = vst.msk [vmem:[%s216 + $0x20] sm:$0xff] %vm1028, %v918
        %1034 = vst.msk [vmem:[%s216 + $0x28] sm:$0xff] %vm1028, %v921
        %1035 = vst.msk [vmem:[%s216 + $0x30] sm:$0xff] %vm1028, %v926
        %1036 = vst.msk [vmem:[%s216 + $0x38] sm:$0xff] %vm1028, %v929
        %1037 = vst.msk [vmem:[%s216 + $0x40] sm:$0xff] %vm1028, %v934
        %1038 = vst.msk [vmem:[%s216 + $0x48] sm:$0xff] %vm1028, %v937
        %1039 = vst.msk [vmem:[%s216 + $0x50] sm:$0xff] %vm1028, %v942
        %1040 = vst.msk [vmem:[%s216 + $0x58] sm:$0xff] %vm1028, %v945
        %1041 = vst.msk [vmem:[%s216 + $0x60] sm:$0xff] %vm1028, %v950
        %1042 = vst.msk [vmem:[%s216 + $0x68] sm:$0xff] %vm1028, %v953
        %1043 = vst.msk [vmem:[%s216 + $0x70] sm:$0xff] %vm1028, %v958
        %1044 = vst.msk [vmem:[%s216 + $0x78] sm:$0xff] %vm1028, %v961
        %1045 = vst.msk [vmem:[%s216 + $0x80] sm:$0xff] %vm1028, %v966
        %1046 = vst.msk [vmem:[%s216 + $0x88] sm:$0xff] %vm1028, %v969
        %1047 = vst.msk [vmem:[%s216 + $0x90] sm:$0xff] %vm1028, %v974
        %1048 = vst.msk [vmem:[%s216 + $0x98] sm:$0xff] %vm1028, %v977
        %1049 = vst.msk [vmem:[%s216 + $0xa0] sm:$0xff] %vm1028, %v982
        %1050 = vst.msk [vmem:[%s216 + $0xa8] sm:$0xff] %vm1028, %v985
        %1051 = vst.msk [vmem:[%s216 + $0xb0] sm:$0xff] %vm1028, %v990
        %1052 = vst.msk [vmem:[%s216 + $0xb8] sm:$0xff] %vm1028, %v993
        %1053 = vst.msk [vmem:[%s216 + $0xc0] sm:$0xff] %vm1028, %v998
        %1054 = vst.msk [vmem:[%s216 + $0xc8] sm:$0xff] %vm1028, %v1001
        %1055 = vst.msk [vmem:[%s216 + $0xd0] sm:$0xff] %vm1028, %v1006
        %1056 = vst.msk [vmem:[%s216 + $0xd8] sm:$0xff] %vm1028, %v1009
        %1057 = vst.msk [vmem:[%s216 + $0xe0] sm:$0xff] %vm1028, %v1014
        %1058 = vst.msk [vmem:[%s216 + $0xe8] sm:$0xff] %vm1028, %v1017
        %1059 = vst.msk [vmem:[%s216 + $0xf0] sm:$0xff] %vm1028, %v1022
        %1060 = vst.msk [vmem:[%s216 + $0xf8] sm:$0xff] %vm1028, %v1025
        %v1061 = vld [vmem:[%s338] sm:$0xff]
        %v1062 = vld [vmem:[%s338 + $0x8] sm:$0xff]
        %v1063 = vld [vmem:[%s338 + $0x18] sm:$0xff]
        %v1064 = vld [vmem:[%s338 + $0x20] sm:$0xff]
        %v1065 = vld [vmem:[%s338 + $0x30] sm:$0xff]
        %v1066 = vld [vmem:[%s338 + $0x38] sm:$0xff]
        %v1067 = vld [vmem:[%s338 + $0x48] sm:$0xff]
        %v1068 = vld [vmem:[%s338 + $0x50] sm:$0xff]
        %v1069 = vld [vmem:[%s338 + $0x60] sm:$0xff]
        %v1070 = vld [vmem:[%s338 + $0x68] sm:$0xff]
        %v1071 = vld [vmem:[%s338 + $0x78] sm:$0xff]
        %v1072 = vld [vmem:[%s338 + $0x80] sm:$0xff]
        %v1073 = vld [vmem:[%s338 + $0x90] sm:$0xff]
        %v1074 = vld [vmem:[%s338 + $0x98] sm:$0xff]
        %v1075 = vld [vmem:[%s338 + $0xa8] sm:$0xff]
        %v1076 = vld [vmem:[%s338 + $0xb0] sm:$0xff]
        %v1077 = vld [vmem:[%s338 + $0xc0] sm:$0xff]
        %v1078 = vld [vmem:[%s338 + $0xc8] sm:$0xff]
        %v1079 = vld [vmem:[%s338 + $0xd8] sm:$0xff]
        %v1080 = vld [vmem:[%s338 + $0xe0] sm:$0xff]
        %v1081 = vld [vmem:[%s338 + $0xf0] sm:$0xff]
        %v1082 = vld [vmem:[%s338 + $0xf8] sm:$0xff]
        %v1083 = vld [vmem:[%s338 + $0x108] sm:$0xff]
        %v1084 = vld [vmem:[%s338 + $0x110] sm:$0xff]
        %v1085 = vld [vmem:[%s338 + $0x120] sm:$0xff]
        %v1086 = vld [vmem:[%s338 + $0x128] sm:$0xff]
        %v1087 = vld [vmem:[%s338 + $0x138] sm:$0xff]
        %v1088 = vld [vmem:[%s338 + $0x140] sm:$0xff]
        %v1089 = vld [vmem:[%s338 + $0x150] sm:$0xff]
        %v1090 = vld [vmem:[%s338 + $0x158] sm:$0xff]
        %v1091 = vld [vmem:[%s338 + $0x168] sm:$0xff]
        %v1092 = vld [vmem:[%s338 + $0x170] sm:$0xff]
        %v1093 = vld [vmem:[%s338 + $0x1] sm:$0xff]
        %v1094 = vld [vmem:[%s338 + $0x9] sm:$0xff]
        %v1095 = vld [vmem:[%s338 + $0x19] sm:$0xff]
        %v1096 = vld [vmem:[%s338 + $0x21] sm:$0xff]
        %v1097 = vld [vmem:[%s338 + $0x31] sm:$0xff]
        %v1098 = vld [vmem:[%s338 + $0x39] sm:$0xff]
        %v1099 = vld [vmem:[%s338 + $0x49] sm:$0xff]
        %v1100 = vld [vmem:[%s338 + $0x51] sm:$0xff]
        %v1101 = vld [vmem:[%s338 + $0x61] sm:$0xff]
        %v1102 = vld [vmem:[%s338 + $0x69] sm:$0xff]
        %v1103 = vld [vmem:[%s338 + $0x79] sm:$0xff]
        %v1104 = vld [vmem:[%s338 + $0x81] sm:$0xff]
        %v1105 = vld [vmem:[%s338 + $0x91] sm:$0xff]
        %v1106 = vld [vmem:[%s338 + $0x99] sm:$0xff]
        %v1107 = vld [vmem:[%s338 + $0xa9] sm:$0xff]
        %v1108 = vld [vmem:[%s338 + $0xb1] sm:$0xff]
        %v1109 = vld [vmem:[%s338 + $0xc1] sm:$0xff]
        %v1110 = vld [vmem:[%s338 + $0xc9] sm:$0xff]
        %v1111 = vld [vmem:[%s338 + $0xd9] sm:$0xff]
        %v1112 = vld [vmem:[%s338 + $0xe1] sm:$0xff]
        %v1113 = vld [vmem:[%s338 + $0xf1] sm:$0xff]
        %v1114 = vld [vmem:[%s338 + $0xf9] sm:$0xff]
        %v1115 = vld [vmem:[%s338 + $0x109] sm:$0xff]
        %v1116 = vld [vmem:[%s338 + $0x111] sm:$0xff]
        %v1117 = vld [vmem:[%s338 + $0x121] sm:$0xff]
        %v1118 = vld [vmem:[%s338 + $0x129] sm:$0xff]
        %v1119 = vld [vmem:[%s338 + $0x139] sm:$0xff]
        %v1120 = vld [vmem:[%s338 + $0x141] sm:$0xff]
        %v1121 = vld [vmem:[%s338 + $0x151] sm:$0xff]
        %v1122 = vld [vmem:[%s338 + $0x159] sm:$0xff]
        %v1123 = vld [vmem:[%s338 + $0x169] sm:$0xff]
        %v1124 = vld [vmem:[%s338 + $0x171] sm:$0xff]
        %v1125 = vld [vmem:[%s338 + $0x2] sm:$0xff]
        %v1126 = vld [vmem:[%s338 + $0xa] sm:$0xff]
        %v1127 = vld [vmem:[%s338 + $0x1a] sm:$0xff]
        %v1128 = vld [vmem:[%s338 + $0x22] sm:$0xff]
        %v1129 = vld [vmem:[%s338 + $0x32] sm:$0xff]
        %v1130 = vld [vmem:[%s338 + $0x3a] sm:$0xff]
        %v1131 = vld [vmem:[%s338 + $0x4a] sm:$0xff]
        %v1132 = vld [vmem:[%s338 + $0x52] sm:$0xff]
        %v1133 = vld [vmem:[%s338 + $0x62] sm:$0xff]
        %v1134 = vld [vmem:[%s338 + $0x6a] sm:$0xff]
        %v1135 = vld [vmem:[%s338 + $0x7a] sm:$0xff]
        %v1136 = vld [vmem:[%s338 + $0x82] sm:$0xff]
        %v1137 = vld [vmem:[%s338 + $0x92] sm:$0xff]
        %v1138 = vld [vmem:[%s338 + $0x9a] sm:$0xff]
        %v1139 = vld [vmem:[%s338 + $0xaa] sm:$0xff]
        %v1140 = vld [vmem:[%s338 + $0xb2] sm:$0xff]
        %v1141 = vld [vmem:[%s338 + $0xc2] sm:$0xff]
        %v1142 = vld [vmem:[%s338 + $0xca] sm:$0xff]
        %v1143 = vld [vmem:[%s338 + $0xda] sm:$0xff]
        %v1144 = vld [vmem:[%s338 + $0xe2] sm:$0xff]
        %v1145 = vld [vmem:[%s338 + $0xf2] sm:$0xff]
        %v1146 = vld [vmem:[%s338 + $0xfa] sm:$0xff]
        %v1147 = vld [vmem:[%s338 + $0x10a] sm:$0xff]
        %v1148 = vld [vmem:[%s338 + $0x112] sm:$0xff]
        %v1149 = vld [vmem:[%s338 + $0x122] sm:$0xff]
        %v1150 = vld [vmem:[%s338 + $0x12a] sm:$0xff]
        %v1151 = vld [vmem:[%s338 + $0x13a] sm:$0xff]
        %v1152 = vld [vmem:[%s338 + $0x142] sm:$0xff]
        %v1153 = vld [vmem:[%s338 + $0x152] sm:$0xff]
        %v1154 = vld [vmem:[%s338 + $0x15a] sm:$0xff]
        %v1155 = vld [vmem:[%s338 + $0x16a] sm:$0xff]
        %v1156 = vld [vmem:[%s338 + $0x172] sm:$0xff]
        %1189 = vrot.lane.b32.xlu0 %v1093, 3
        %v1190 = vpop.permute.xlu0 %1189
        %1191 = vrot.lane.b32.xlu0 %v1094, 3
        %v1192 = vpop.permute.xlu0 %1191
        %1193 = vrot.lane.b32.xlu0 %v1095, 3
        %v1194 = vpop.permute.xlu0 %1193
        %1195 = vrot.lane.b32.xlu0 %v1096, 3
        %v1196 = vpop.permute.xlu0 %1195
        %1197 = vrot.lane.b32.xlu0 %v1097, 3
        %v1198 = vpop.permute.xlu0 %1197
        %1199 = vrot.lane.b32.xlu0 %v1098, 3
        %v1200 = vpop.permute.xlu0 %1199
        %1201 = vrot.lane.b32.xlu0 %v1099, 3
        %v1202 = vpop.permute.xlu0 %1201
        %1203 = vrot.lane.b32.xlu0 %v1100, 3
        %v1204 = vpop.permute.xlu0 %1203
        %1205 = vrot.lane.b32.xlu0 %v1101, 3
        %v1206 = vpop.permute.xlu0 %1205
        %1207 = vrot.lane.b32.xlu0 %v1102, 3
        %v1208 = vpop.permute.xlu0 %1207
        %1209 = vrot.lane.b32.xlu0 %v1103, 3
        %v1210 = vpop.permute.xlu0 %1209
        %1211 = vrot.lane.b32.xlu0 %v1104, 3
        %v1212 = vpop.permute.xlu0 %1211
        %1213 = vrot.lane.b32.xlu0 %v1105, 3
        %v1214 = vpop.permute.xlu0 %1213
        %1215 = vrot.lane.b32.xlu0 %v1106, 3
        %v1216 = vpop.permute.xlu0 %1215
        %1217 = vrot.lane.b32.xlu0 %v1107, 3
        %v1218 = vpop.permute.xlu0 %1217
        %1219 = vrot.lane.b32.xlu0 %v1108, 3
        %v1220 = vpop.permute.xlu0 %1219
        %1221 = vrot.lane.b32.xlu0 %v1109, 3
        %v1222 = vpop.permute.xlu0 %1221
        %1223 = vrot.lane.b32.xlu0 %v1110, 3
        %v1224 = vpop.permute.xlu0 %1223
        %1225 = vrot.lane.b32.xlu0 %v1111, 3
        %v1226 = vpop.permute.xlu0 %1225
        %1227 = vrot.lane.b32.xlu0 %v1112, 3
        %v1228 = vpop.permute.xlu0 %1227
        %1229 = vrot.lane.b32.xlu0 %v1113, 3
        %v1230 = vpop.permute.xlu0 %1229
        %1231 = vrot.lane.b32.xlu0 %v1114, 3
        %v1232 = vpop.permute.xlu0 %1231
        %1233 = vrot.lane.b32.xlu0 %v1115, 3
        %v1234 = vpop.permute.xlu0 %1233
        %1235 = vrot.lane.b32.xlu0 %v1116, 3
        %v1236 = vpop.permute.xlu0 %1235
        %1237 = vrot.lane.b32.xlu0 %v1117, 3
        %v1238 = vpop.permute.xlu0 %1237
        %1239 = vrot.lane.b32.xlu0 %v1118, 3
        %v1240 = vpop.permute.xlu0 %1239
        %1241 = vrot.lane.b32.xlu0 %v1119, 3
        %v1242 = vpop.permute.xlu0 %1241
        %1243 = vrot.lane.b32.xlu0 %v1120, 3
        %v1244 = vpop.permute.xlu0 %1243
        %1245 = vrot.lane.b32.xlu0 %v1121, 3
        %v1246 = vpop.permute.xlu0 %1245
        %1247 = vrot.lane.b32.xlu0 %v1122, 3
        %v1248 = vpop.permute.xlu0 %1247
        %1249 = vrot.lane.b32.xlu0 %v1123, 3
        %v1250 = vpop.permute.xlu0 %1249
        %1251 = vrot.lane.b32.xlu0 %v1124, 3
        %v1252 = vpop.permute.xlu0 %1251
        %1317 = vrot.lane.b32.xlu0 %v1125, 6
        %v1318 = vpop.permute.xlu0 %1317
        %1319 = vrot.lane.b32.xlu0 %v1126, 6
        %v1320 = vpop.permute.xlu0 %1319
        %1321 = vrot.lane.b32.xlu0 %v1127, 6
        %v1322 = vpop.permute.xlu0 %1321
        %1323 = vrot.lane.b32.xlu0 %v1128, 6
        %v1324 = vpop.permute.xlu0 %1323
        %1325 = vrot.lane.b32.xlu0 %v1129, 6
        %v1326 = vpop.permute.xlu0 %1325
        %1327 = vrot.lane.b32.xlu0 %v1130, 6
        %v1328 = vpop.permute.xlu0 %1327
        %1329 = vrot.lane.b32.xlu0 %v1131, 6
        %v1330 = vpop.permute.xlu0 %1329
        %1331 = vrot.lane.b32.xlu0 %v1132, 6
        %v1332 = vpop.permute.xlu0 %1331
        %1333 = vrot.lane.b32.xlu0 %v1133, 6
        %v1334 = vpop.permute.xlu0 %1333
        %1335 = vrot.lane.b32.xlu0 %v1134, 6
        %v1336 = vpop.permute.xlu0 %1335
        %1337 = vrot.lane.b32.xlu0 %v1135, 6
        %v1338 = vpop.permute.xlu0 %1337
        %1339 = vrot.lane.b32.xlu0 %v1136, 6
        %v1340 = vpop.permute.xlu0 %1339
        %1341 = vrot.lane.b32.xlu0 %v1137, 6
        %v1342 = vpop.permute.xlu0 %1341
        %1343 = vrot.lane.b32.xlu0 %v1138, 6
        %v1344 = vpop.permute.xlu0 %1343
        %1345 = vrot.lane.b32.xlu0 %v1139, 6
        %v1346 = vpop.permute.xlu0 %1345
        %1347 = vrot.lane.b32.xlu0 %v1140, 6
        %v1348 = vpop.permute.xlu0 %1347
        %1349 = vrot.lane.b32.xlu0 %v1141, 6
        %v1350 = vpop.permute.xlu0 %1349
        %1351 = vrot.lane.b32.xlu0 %v1142, 6
        %v1352 = vpop.permute.xlu0 %1351
        %1353 = vrot.lane.b32.xlu0 %v1143, 6
        %v1354 = vpop.permute.xlu0 %1353
        %1355 = vrot.lane.b32.xlu0 %v1144, 6
        %v1356 = vpop.permute.xlu0 %1355
        %1357 = vrot.lane.b32.xlu0 %v1145, 6
        %v1358 = vpop.permute.xlu0 %1357
        %1359 = vrot.lane.b32.xlu0 %v1146, 6
        %v1360 = vpop.permute.xlu0 %1359
        %1361 = vrot.lane.b32.xlu0 %v1147, 6
        %v1362 = vpop.permute.xlu0 %1361
        %1363 = vrot.lane.b32.xlu0 %v1148, 6
        %v1364 = vpop.permute.xlu0 %1363
        %1365 = vrot.lane.b32.xlu0 %v1149, 6
        %v1366 = vpop.permute.xlu0 %1365
        %1367 = vrot.lane.b32.xlu0 %v1150, 6
        %v1368 = vpop.permute.xlu0 %1367
        %1369 = vrot.lane.b32.xlu0 %v1151, 6
        %v1370 = vpop.permute.xlu0 %1369
        %1371 = vrot.lane.b32.xlu0 %v1152, 6
        %v1372 = vpop.permute.xlu0 %1371
        %1373 = vrot.lane.b32.xlu0 %v1153, 6
        %v1374 = vpop.permute.xlu0 %1373
        %1375 = vrot.lane.b32.xlu0 %v1154, 6
        %v1376 = vpop.permute.xlu0 %1375
        %1377 = vrot.lane.b32.xlu0 %v1155, 6
        %v1378 = vpop.permute.xlu0 %1377
        %1379 = vrot.lane.b32.xlu0 %v1156, 6
        %v1380 = vpop.permute.xlu0 %1379
        %v1413 = vsel %vm218, %v1061, %v1190
        %v1414 = vsel %vm218, %v1062, %v1192
        %v1415 = vsel %vm218, %v1063, %v1194
        %v1416 = vsel %vm218, %v1064, %v1196
        %v1417 = vsel %vm218, %v1065, %v1198
        %v1418 = vsel %vm218, %v1066, %v1200
        %v1419 = vsel %vm218, %v1067, %v1202
        %v1420 = vsel %vm218, %v1068, %v1204
        %v1421 = vsel %vm218, %v1069, %v1206
        %v1422 = vsel %vm218, %v1070, %v1208
        %v1423 = vsel %vm218, %v1071, %v1210
        %v1424 = vsel %vm218, %v1072, %v1212
        %v1425 = vsel %vm218, %v1073, %v1214
        %v1426 = vsel %vm218, %v1074, %v1216
        %v1427 = vsel %vm218, %v1075, %v1218
        %v1428 = vsel %vm218, %v1076, %v1220
        %v1429 = vsel %vm218, %v1077, %v1222
        %v1430 = vsel %vm218, %v1078, %v1224
        %v1431 = vsel %vm218, %v1079, %v1226
        %v1432 = vsel %vm218, %v1080, %v1228
        %v1433 = vsel %vm218, %v1081, %v1230
        %v1434 = vsel %vm218, %v1082, %v1232
        %v1435 = vsel %vm218, %v1083, %v1234
        %v1436 = vsel %vm218, %v1084, %v1236
        %v1437 = vsel %vm218, %v1085, %v1238
        %v1438 = vsel %vm218, %v1086, %v1240
        %v1439 = vsel %vm218, %v1087, %v1242
        %v1440 = vsel %vm218, %v1088, %v1244
        %v1441 = vsel %vm218, %v1089, %v1246
        %v1442 = vsel %vm218, %v1090, %v1248
        %v1443 = vsel %vm218, %v1091, %v1250
        %v1444 = vsel %vm218, %v1092, %v1252
        %v1445 = vsel %vm755, %v1413, %v1318
        %v1446 = vsel %vm755, %v1414, %v1320
        %v1447 = vsel %vm755, %v1415, %v1322
        %v1448 = vsel %vm755, %v1416, %v1324
        %v1449 = vsel %vm755, %v1417, %v1326
        %v1450 = vsel %vm755, %v1418, %v1328
        %v1451 = vsel %vm755, %v1419, %v1330
        %v1452 = vsel %vm755, %v1420, %v1332
        %v1453 = vsel %vm755, %v1421, %v1334
        %v1454 = vsel %vm755, %v1422, %v1336
        %v1455 = vsel %vm755, %v1423, %v1338
        %v1456 = vsel %vm755, %v1424, %v1340
        %v1457 = vsel %vm755, %v1425, %v1342
        %v1458 = vsel %vm755, %v1426, %v1344
        %v1459 = vsel %vm755, %v1427, %v1346
        %v1460 = vsel %vm755, %v1428, %v1348
        %v1461 = vsel %vm755, %v1429, %v1350
        %v1462 = vsel %vm755, %v1430, %v1352
        %v1463 = vsel %vm755, %v1431, %v1354
        %v1464 = vsel %vm755, %v1432, %v1356
        %v1465 = vsel %vm755, %v1433, %v1358
        %v1466 = vsel %vm755, %v1434, %v1360
        %v1467 = vsel %vm755, %v1435, %v1362
        %v1468 = vsel %vm755, %v1436, %v1364
        %v1469 = vsel %vm755, %v1437, %v1366
        %v1470 = vsel %vm755, %v1438, %v1368
        %v1471 = vsel %vm755, %v1439, %v1370
        %v1472 = vsel %vm755, %v1440, %v1372
        %v1473 = vsel %vm755, %v1441, %v1374
        %v1474 = vsel %vm755, %v1442, %v1376
        %v1475 = vsel %vm755, %v1443, %v1378
        %v1476 = vsel %vm755, %v1444, %v1380
        %v1477 = vpack.c.bf16 %v1446, %v1445
        %v1478 = vpack.c.bf16 %v1448, %v1447
        %v1479 = vpack.c.bf16 %v1450, %v1449
        %v1480 = vpack.c.bf16 %v1452, %v1451
        %v1481 = vpack.c.bf16 %v1454, %v1453
        %v1482 = vpack.c.bf16 %v1456, %v1455
        %v1483 = vpack.c.bf16 %v1458, %v1457
        %v1484 = vpack.c.bf16 %v1460, %v1459
        %v1485 = vpack.c.bf16 %v1462, %v1461
        %v1486 = vpack.c.bf16 %v1464, %v1463
        %v1487 = vpack.c.bf16 %v1466, %v1465
        %v1488 = vpack.c.bf16 %v1468, %v1467
        %v1489 = vpack.c.bf16 %v1470, %v1469
        %v1490 = vpack.c.bf16 %v1472, %v1471
        %v1491 = vpack.c.bf16 %v1474, %v1473
        %v1492 = vpack.c.bf16 %v1476, %v1475
        %s1493 = scalar_lea.vmem %s1, 8
        %v1494 = vld [vmem:[%s1493] sm:$0xf]
        %v1495 = vld [vmem:[%s1493 + $0x4] sm:$0x1]
        %v1498 = vunpack.c.l.b16 %v1494
        %v1499 = vunpack.c.l.b16 %v1495
        %v1500 = vpack.c.b16 %v1499, %v1498
        %v1502 = vsel %vm811, %v1477, 0
        %v1505 = vsel %vm811, %v1478, 0
        %v1508 = vsel %vm811, %v1479, 0
        %v1511 = vsel %vm811, %v1480, 0
        %v1514 = vsel %vm811, %v1481, 0
        %v1517 = vsel %vm811, %v1482, 0
        %v1520 = vsel %vm811, %v1483, 0
        %v1523 = vsel %vm811, %v1484, 0
        %v1526 = vsel %vm811, %v1485, 0
        %v1529 = vsel %vm811, %v1486, 0
        %v1532 = vsel %vm811, %v1487, 0
        %v1535 = vsel %vm811, %v1488, 0
        %v1538 = vsel %vm811, %v1489, 0
        %v1541 = vsel %vm811, %v1490, 0
        %v1544 = vsel %vm811, %v1491, 0
        %v1547 = vsel %vm811, %v1492, 0
        %v1550 = vand.u32 %v1500, %v863
        %1552 = vmatprep.subr.bf16.mxu0 0
        %1553 = vmatpush1.bf16.msra.mxu0 0
        %1554 = vmatprep.subr.bf16.mxu0 0
        %1555 = vmatpush1.bf16.msra.mxu0 0
        %1556 = vmatprep.subr.bf16.mxu0 0
        %1557 = vmatpush1.bf16.msra.mxu0 0
        %1558 = vmatprep.subr.bf16.mxu0 0
        %1559 = vmatpush1.bf16.msra.mxu0 0
        %1560 = vmatprep.subr.bf16.mxu0 0
        %1561 = vmatpush1.bf16.msra.mxu0 0
        %1562 = vmatprep.subr.bf16.mxu0 0
        %1563 = vmatpush1.bf16.msra.mxu0 0
        %1564 = vmatprep.subr.bf16.mxu0 0
        %1565 = vmatpush1.bf16.msra.mxu0 0
        %1566 = vmatprep.subr.bf16.mxu0 0
        %1567 = vmatpush1.bf16.msra.mxu0 %v1550
        %1568 = vmatprep.subr.bf16.mxu0 0
        %1569 = vmatpush2.bf16.msra.mxu0 0
        %1570 = vmatprep.subr.bf16.mxu0 0
        %1571 = vmatpush2.bf16.msra.mxu0 0
        %1572 = vmatprep.subr.bf16.mxu0 0
        %1573 = vmatpush2.bf16.msra.mxu0 0
        %1574 = vmatprep.subr.bf16.mxu0 0
        %1575 = vmatpush2.bf16.msra.mxu0 0
        %1576 = vmatprep.subr.bf16.mxu0 0
        %1577 = vmatpush2.bf16.msra.mxu0 0
        %1578 = vmatprep.subr.bf16.mxu0 0
        %1579 = vmatpush2.bf16.msra.mxu0 0
        %1580 = vmatprep.subr.bf16.mxu0 0
        %1581 = vmatpush2.bf16.msra.mxu0 0
        %1582 = vmatprep.subr.bf16.mxu0 0
        %1583 = vmatpush2.bf16.msra.mxu0 0
        %1584 = vmatprep.mubr.bf16.mxu0 0
        %1585 = vmatmul.mubr.bf16.gmra.mxu0 %v1502
        %v1586 = vpop.f32.mrf.mxu0
        %v1587 = vadd.f32 0.0, %v1586
        %v1588 = vpop.f32.mrf.mxu0
        %v1589 = vpop.f32.mrf.mxu0
        %v1590 = vadd.f32 0.0, %v1589
        %v1591 = vpop.f32.mrf.mxu0
        %1592 = vmatprep.mubr.bf16.mxu0 0
        %1593 = vmatmul.mubr.bf16.gmra.mxu0 %v1505
        %v1594 = vpop.f32.mrf.mxu0
        %v1595 = vadd.f32 0.0, %v1594
        %v1596 = vpop.f32.mrf.mxu0
        %v1597 = vpop.f32.mrf.mxu0
        %v1598 = vadd.f32 0.0, %v1597
        %v1599 = vpop.f32.mrf.mxu0
        %1600 = vmatprep.mubr.bf16.mxu0 0
        %1601 = vmatmul.mubr.bf16.gmra.mxu0 %v1508
        %v1602 = vpop.f32.mrf.mxu0
        %v1603 = vadd.f32 0.0, %v1602
        %v1604 = vpop.f32.mrf.mxu0
        %v1605 = vpop.f32.mrf.mxu0
        %v1606 = vadd.f32 0.0, %v1605
        %v1607 = vpop.f32.mrf.mxu0
        %1608 = vmatprep.mubr.bf16.mxu0 0
        %1609 = vmatmul.mubr.bf16.gmra.mxu0 %v1511
        %v1610 = vpop.f32.mrf.mxu0
        %v1611 = vadd.f32 0.0, %v1610
        %v1612 = vpop.f32.mrf.mxu0
        %v1613 = vpop.f32.mrf.mxu0
        %v1614 = vadd.f32 0.0, %v1613
        %v1615 = vpop.f32.mrf.mxu0
        %1616 = vmatprep.mubr.bf16.mxu0 0
        %1617 = vmatmul.mubr.bf16.gmra.mxu0 %v1514
        %v1618 = vpop.f32.mrf.mxu0
        %v1619 = vadd.f32 0.0, %v1618
        %v1620 = vpop.f32.mrf.mxu0
        %v1621 = vpop.f32.mrf.mxu0
        %v1622 = vadd.f32 0.0, %v1621
        %v1623 = vpop.f32.mrf.mxu0
        %1624 = vmatprep.mubr.bf16.mxu0 0
        %1625 = vmatmul.mubr.bf16.gmra.mxu0 %v1517
        %v1626 = vpop.f32.mrf.mxu0
        %v1627 = vadd.f32 0.0, %v1626
        %v1628 = vpop.f32.mrf.mxu0
        %v1629 = vpop.f32.mrf.mxu0
        %v1630 = vadd.f32 0.0, %v1629
        %v1631 = vpop.f32.mrf.mxu0
        %1632 = vmatprep.mubr.bf16.mxu0 0
        %1633 = vmatmul.mubr.bf16.gmra.mxu0 %v1520
        %v1634 = vpop.f32.mrf.mxu0
        %v1635 = vadd.f32 0.0, %v1634
        %v1636 = vpop.f32.mrf.mxu0
        %v1637 = vpop.f32.mrf.mxu0
        %v1638 = vadd.f32 0.0, %v1637
        %v1639 = vpop.f32.mrf.mxu0
        %1640 = vmatprep.mubr.bf16.mxu0 0
        %1641 = vmatmul.mubr.bf16.gmra.mxu0 %v1523
        %v1642 = vpop.f32.mrf.mxu0
        %v1643 = vadd.f32 0.0, %v1642
        %v1644 = vpop.f32.mrf.mxu0
        %v1645 = vpop.f32.mrf.mxu0
        %v1646 = vadd.f32 0.0, %v1645
        %v1647 = vpop.f32.mrf.mxu0
        %1648 = vmatprep.mubr.bf16.mxu0 0
        %1649 = vmatmul.mubr.bf16.gmra.mxu0 %v1526
        %v1650 = vpop.f32.mrf.mxu0
        %v1651 = vadd.f32 0.0, %v1650
        %v1652 = vpop.f32.mrf.mxu0
        %v1653 = vpop.f32.mrf.mxu0
        %v1654 = vadd.f32 0.0, %v1653
        %v1655 = vpop.f32.mrf.mxu0
        %1656 = vmatprep.mubr.bf16.mxu0 0
        %1657 = vmatmul.mubr.bf16.gmra.mxu0 %v1529
        %v1658 = vpop.f32.mrf.mxu0
        %v1659 = vadd.f32 0.0, %v1658
        %v1660 = vpop.f32.mrf.mxu0
        %v1661 = vpop.f32.mrf.mxu0
        %v1662 = vadd.f32 0.0, %v1661
        %v1663 = vpop.f32.mrf.mxu0
        %1664 = vmatprep.mubr.bf16.mxu0 0
        %1665 = vmatmul.mubr.bf16.gmra.mxu0 %v1532
        %v1666 = vpop.f32.mrf.mxu0
        %v1667 = vadd.f32 0.0, %v1666
        %v1668 = vpop.f32.mrf.mxu0
        %v1669 = vpop.f32.mrf.mxu0
        %v1670 = vadd.f32 0.0, %v1669
        %v1671 = vpop.f32.mrf.mxu0
        %1672 = vmatprep.mubr.bf16.mxu0 0
        %1673 = vmatmul.mubr.bf16.gmra.mxu0 %v1535
        %v1674 = vpop.f32.mrf.mxu0
        %v1675 = vadd.f32 0.0, %v1674
        %v1676 = vpop.f32.mrf.mxu0
        %v1677 = vpop.f32.mrf.mxu0
        %v1678 = vadd.f32 0.0, %v1677
        %v1679 = vpop.f32.mrf.mxu0
        %1680 = vmatprep.mubr.bf16.mxu0 0
        %1681 = vmatmul.mubr.bf16.gmra.mxu0 %v1538
        %v1682 = vpop.f32.mrf.mxu0
        %v1683 = vadd.f32 0.0, %v1682
        %v1684 = vpop.f32.mrf.mxu0
        %v1685 = vpop.f32.mrf.mxu0
        %v1686 = vadd.f32 0.0, %v1685
        %v1687 = vpop.f32.mrf.mxu0
        %1688 = vmatprep.mubr.bf16.mxu0 0
        %1689 = vmatmul.mubr.bf16.gmra.mxu0 %v1541
        %v1690 = vpop.f32.mrf.mxu0
        %v1691 = vadd.f32 0.0, %v1690
        %v1692 = vpop.f32.mrf.mxu0
        %v1693 = vpop.f32.mrf.mxu0
        %v1694 = vadd.f32 0.0, %v1693
        %v1695 = vpop.f32.mrf.mxu0
        %1696 = vmatprep.mubr.bf16.mxu0 0
        %1697 = vmatmul.mubr.bf16.gmra.mxu0 %v1544
        %v1698 = vpop.f32.mrf.mxu0
        %v1699 = vadd.f32 0.0, %v1698
        %v1700 = vpop.f32.mrf.mxu0
        %v1701 = vpop.f32.mrf.mxu0
        %v1702 = vadd.f32 0.0, %v1701
        %v1703 = vpop.f32.mrf.mxu0
        %1704 = vmatprep.mubr.bf16.mxu0 0
        %1705 = vmatmul.mubr.bf16.gmra.mxu0 %v1547
        %v1706 = vpop.f32.mrf.mxu0
        %v1707 = vadd.f32 0.0, %v1706
        %v1708 = vpop.f32.mrf.mxu0
        %v1709 = vpop.f32.mrf.mxu0
        %v1710 = vadd.f32 0.0, %v1709
        %v1711 = vpop.f32.mrf.mxu0
        %1712 = vdwg.mxu0
        %v1713 = vld [vmem:[%s216] sm:$0xff]
        %v1714 = vld [vmem:[%s216 + $0x8] sm:$0xff]
        %v1715 = vld [vmem:[%s216 + $0x10] sm:$0xff]
        %v1716 = vld [vmem:[%s216 + $0x18] sm:$0xff]
        %v1717 = vld [vmem:[%s216 + $0x20] sm:$0xff]
        %v1718 = vld [vmem:[%s216 + $0x28] sm:$0xff]
        %v1719 = vld [vmem:[%s216 + $0x30] sm:$0xff]
        %v1720 = vld [vmem:[%s216 + $0x38] sm:$0xff]
        %v1721 = vld [vmem:[%s216 + $0x40] sm:$0xff]
        %v1722 = vld [vmem:[%s216 + $0x48] sm:$0xff]
        %v1723 = vld [vmem:[%s216 + $0x50] sm:$0xff]
        %v1724 = vld [vmem:[%s216 + $0x58] sm:$0xff]
        %v1725 = vld [vmem:[%s216 + $0x60] sm:$0xff]
        %v1726 = vld [vmem:[%s216 + $0x68] sm:$0xff]
        %v1727 = vld [vmem:[%s216 + $0x70] sm:$0xff]
        %v1728 = vld [vmem:[%s216 + $0x78] sm:$0xff]
        %v1729 = vld [vmem:[%s216 + $0x80] sm:$0xff]
        %v1730 = vld [vmem:[%s216 + $0x88] sm:$0xff]
        %v1731 = vld [vmem:[%s216 + $0x90] sm:$0xff]
        %v1732 = vld [vmem:[%s216 + $0x98] sm:$0xff]
        %v1733 = vld [vmem:[%s216 + $0xa0] sm:$0xff]
        %v1734 = vld [vmem:[%s216 + $0xa8] sm:$0xff]
        %v1735 = vld [vmem:[%s216 + $0xb0] sm:$0xff]
        %v1736 = vld [vmem:[%s216 + $0xb8] sm:$0xff]
        %v1737 = vld [vmem:[%s216 + $0xc0] sm:$0xff]
        %v1738 = vld [vmem:[%s216 + $0xc8] sm:$0xff]
        %v1739 = vld [vmem:[%s216 + $0xd0] sm:$0xff]
        %v1740 = vld [vmem:[%s216 + $0xd8] sm:$0xff]
        %v1741 = vld [vmem:[%s216 + $0xe0] sm:$0xff]
        %v1742 = vld [vmem:[%s216 + $0xe8] sm:$0xff]
        %v1743 = vld [vmem:[%s216 + $0xf0] sm:$0xff]
        %v1744 = vld [vmem:[%s216 + $0xf8] sm:$0xff]
        %v1745 = vadd.f32 %v1713, %v1587
        %v1746 = vadd.f32 %v1714, %v1590
        %v1747 = vadd.f32 %v1715, %v1595
        %v1748 = vadd.f32 %v1716, %v1598
        %v1749 = vadd.f32 %v1717, %v1603
        %v1750 = vadd.f32 %v1718, %v1606
        %v1751 = vadd.f32 %v1719, %v1611
        %v1752 = vadd.f32 %v1720, %v1614
        %v1753 = vadd.f32 %v1721, %v1619
        %v1754 = vadd.f32 %v1722, %v1622
        %v1755 = vadd.f32 %v1723, %v1627
        %v1756 = vadd.f32 %v1724, %v1630
        %v1757 = vadd.f32 %v1725, %v1635
        %v1758 = vadd.f32 %v1726, %v1638
        %v1759 = vadd.f32 %v1727, %v1643
        %v1760 = vadd.f32 %v1728, %v1646
        %v1761 = vadd.f32 %v1729, %v1651
        %v1762 = vadd.f32 %v1730, %v1654
        %v1763 = vadd.f32 %v1731, %v1659
        %v1764 = vadd.f32 %v1732, %v1662
        %v1765 = vadd.f32 %v1733, %v1667
        %v1766 = vadd.f32 %v1734, %v1670
        %v1767 = vadd.f32 %v1735, %v1675
        %v1768 = vadd.f32 %v1736, %v1678
        %v1769 = vadd.f32 %v1737, %v1683
        %v1770 = vadd.f32 %v1738, %v1686
        %v1771 = vadd.f32 %v1739, %v1691
        %v1772 = vadd.f32 %v1740, %v1694
        %v1773 = vadd.f32 %v1741, %v1699
        %v1774 = vadd.f32 %v1742, %v1702
        %v1775 = vadd.f32 %v1743, %v1707
        %v1776 = vadd.f32 %v1744, %v1710
        %1777 = vst.msk [vmem:[%s216] sm:$0xff] %vm1028, %v1745
        %1778 = vst.msk [vmem:[%s216 + $0x8] sm:$0xff] %vm1028, %v1746
        %1779 = vst.msk [vmem:[%s216 + $0x10] sm:$0xff] %vm1028, %v1747
        %1780 = vst.msk [vmem:[%s216 + $0x18] sm:$0xff] %vm1028, %v1748
        %1781 = vst.msk [vmem:[%s216 + $0x20] sm:$0xff] %vm1028, %v1749
        %1782 = vst.msk [vmem:[%s216 + $0x28] sm:$0xff] %vm1028, %v1750
        %1783 = vst.msk [vmem:[%s216 + $0x30] sm:$0xff] %vm1028, %v1751
        %1784 = vst.msk [vmem:[%s216 + $0x38] sm:$0xff] %vm1028, %v1752
        %1785 = vst.msk [vmem:[%s216 + $0x40] sm:$0xff] %vm1028, %v1753
        %1786 = vst.msk [vmem:[%s216 + $0x48] sm:$0xff] %vm1028, %v1754
        %1787 = vst.msk [vmem:[%s216 + $0x50] sm:$0xff] %vm1028, %v1755
        %1788 = vst.msk [vmem:[%s216 + $0x58] sm:$0xff] %vm1028, %v1756
        %1789 = vst.msk [vmem:[%s216 + $0x60] sm:$0xff] %vm1028, %v1757
        %1790 = vst.msk [vmem:[%s216 + $0x68] sm:$0xff] %vm1028, %v1758
        %1791 = vst.msk [vmem:[%s216 + $0x70] sm:$0xff] %vm1028, %v1759
        %1792 = vst.msk [vmem:[%s216 + $0x78] sm:$0xff] %vm1028, %v1760
        %1793 = vst.msk [vmem:[%s216 + $0x80] sm:$0xff] %vm1028, %v1761
        %1794 = vst.msk [vmem:[%s216 + $0x88] sm:$0xff] %vm1028, %v1762
        %1795 = vst.msk [vmem:[%s216 + $0x90] sm:$0xff] %vm1028, %v1763
        %1796 = vst.msk [vmem:[%s216 + $0x98] sm:$0xff] %vm1028, %v1764
        %1797 = vst.msk [vmem:[%s216 + $0xa0] sm:$0xff] %vm1028, %v1765
        %1798 = vst.msk [vmem:[%s216 + $0xa8] sm:$0xff] %vm1028, %v1766
        %1799 = vst.msk [vmem:[%s216 + $0xb0] sm:$0xff] %vm1028, %v1767
        %1800 = vst.msk [vmem:[%s216 + $0xb8] sm:$0xff] %vm1028, %v1768
        %1801 = vst.msk [vmem:[%s216 + $0xc0] sm:$0xff] %vm1028, %v1769
        %1802 = vst.msk [vmem:[%s216 + $0xc8] sm:$0xff] %vm1028, %v1770
        %1803 = vst.msk [vmem:[%s216 + $0xd0] sm:$0xff] %vm1028, %v1771
        %1804 = vst.msk [vmem:[%s216 + $0xd8] sm:$0xff] %vm1028, %v1772
        %1805 = vst.msk [vmem:[%s216 + $0xe0] sm:$0xff] %vm1028, %v1773
        %1806 = vst.msk [vmem:[%s216 + $0xe8] sm:$0xff] %vm1028, %v1774
        %1807 = vst.msk [vmem:[%s216 + $0xf0] sm:$0xff] %vm1028, %v1775
        %1808 = vst.msk [vmem:[%s216 + $0xf8] sm:$0xff] %vm1028, %v1776
        %s1809 = scalar_lea.vmem [#allocation2], 48
        %v1810 = vld [vmem:[%s1809] sm:$0xff]
        %v1811 = vld [vmem:[%s1809 + $0x8] sm:$0xff]
        %v1812 = vld [vmem:[%s1809 + $0x18] sm:$0xff]
        %v1813 = vld [vmem:[%s1809 + $0x20] sm:$0xff]
        %v1814 = vld [vmem:[%s1809 + $0x30] sm:$0xff]
        %v1815 = vld [vmem:[%s1809 + $0x38] sm:$0xff]
        %v1816 = vld [vmem:[%s1809 + $0x48] sm:$0xff]
        %v1817 = vld [vmem:[%s1809 + $0x50] sm:$0xff]
        %v1818 = vld [vmem:[%s1809 + $0x60] sm:$0xff]
        %v1819 = vld [vmem:[%s1809 + $0x68] sm:$0xff]
        %v1820 = vld [vmem:[%s1809 + $0x78] sm:$0xff]
        %v1821 = vld [vmem:[%s1809 + $0x80] sm:$0xff]
        %v1822 = vld [vmem:[%s1809 + $0x90] sm:$0xff]
        %v1823 = vld [vmem:[%s1809 + $0x98] sm:$0xff]
        %v1824 = vld [vmem:[%s1809 + $0xa8] sm:$0xff]
        %v1825 = vld [vmem:[%s1809 + $0xb0] sm:$0xff]
        %v1826 = vld [vmem:[%s1809 + $0xc0] sm:$0xff]
        %v1827 = vld [vmem:[%s1809 + $0xc8] sm:$0xff]
        %v1828 = vld [vmem:[%s1809 + $0xd8] sm:$0xff]
        %v1829 = vld [vmem:[%s1809 + $0xe0] sm:$0xff]
        %v1830 = vld [vmem:[%s1809 + $0xf0] sm:$0xff]
        %v1831 = vld [vmem:[%s1809 + $0xf8] sm:$0xff]
        %v1832 = vld [vmem:[%s1809 + $0x108] sm:$0xff]
        %v1833 = vld [vmem:[%s1809 + $0x110] sm:$0xff]
        %v1834 = vld [vmem:[%s1809 + $0x120] sm:$0xff]
        %v1835 = vld [vmem:[%s1809 + $0x128] sm:$0xff]
        %v1836 = vld [vmem:[%s1809 + $0x138] sm:$0xff]
        %v1837 = vld [vmem:[%s1809 + $0x140] sm:$0xff]
        %v1838 = vld [vmem:[%s1809 + $0x150] sm:$0xff]
        %v1839 = vld [vmem:[%s1809 + $0x158] sm:$0xff]
        %v1840 = vld [vmem:[%s1809 + $0x168] sm:$0xff]
        %v1841 = vld [vmem:[%s1809 + $0x170] sm:$0xff]
        %v1842 = vld [vmem:[%s1809 + $0x1] sm:$0xff]
        %v1843 = vld [vmem:[%s1809 + $0x9] sm:$0xff]
        %v1844 = vld [vmem:[%s1809 + $0x19] sm:$0xff]
        %v1845 = vld [vmem:[%s1809 + $0x21] sm:$0xff]
        %v1846 = vld [vmem:[%s1809 + $0x31] sm:$0xff]
        %v1847 = vld [vmem:[%s1809 + $0x39] sm:$0xff]
        %v1848 = vld [vmem:[%s1809 + $0x49] sm:$0xff]
        %v1849 = vld [vmem:[%s1809 + $0x51] sm:$0xff]
        %v1850 = vld [vmem:[%s1809 + $0x61] sm:$0xff]
        %v1851 = vld [vmem:[%s1809 + $0x69] sm:$0xff]
        %v1852 = vld [vmem:[%s1809 + $0x79] sm:$0xff]
        %v1853 = vld [vmem:[%s1809 + $0x81] sm:$0xff]
        %v1854 = vld [vmem:[%s1809 + $0x91] sm:$0xff]
        %v1855 = vld [vmem:[%s1809 + $0x99] sm:$0xff]
        %v1856 = vld [vmem:[%s1809 + $0xa9] sm:$0xff]
        %v1857 = vld [vmem:[%s1809 + $0xb1] sm:$0xff]
        %v1858 = vld [vmem:[%s1809 + $0xc1] sm:$0xff]
        %v1859 = vld [vmem:[%s1809 + $0xc9] sm:$0xff]
        %v1860 = vld [vmem:[%s1809 + $0xd9] sm:$0xff]
        %v1861 = vld [vmem:[%s1809 + $0xe1] sm:$0xff]
        %v1862 = vld [vmem:[%s1809 + $0xf1] sm:$0xff]
        %v1863 = vld [vmem:[%s1809 + $0xf9] sm:$0xff]
        %v1864 = vld [vmem:[%s1809 + $0x109] sm:$0xff]
        %v1865 = vld [vmem:[%s1809 + $0x111] sm:$0xff]
        %v1866 = vld [vmem:[%s1809 + $0x121] sm:$0xff]
        %v1867 = vld [vmem:[%s1809 + $0x129] sm:$0xff]
        %v1868 = vld [vmem:[%s1809 + $0x139] sm:$0xff]
        %v1869 = vld [vmem:[%s1809 + $0x141] sm:$0xff]
        %v1870 = vld [vmem:[%s1809 + $0x151] sm:$0xff]
        %v1871 = vld [vmem:[%s1809 + $0x159] sm:$0xff]
        %v1872 = vld [vmem:[%s1809 + $0x169] sm:$0xff]
        %v1873 = vld [vmem:[%s1809 + $0x171] sm:$0xff]
        %v1874 = vld [vmem:[%s1809 + $0x2] sm:$0xff]
        %v1875 = vld [vmem:[%s1809 + $0xa] sm:$0xff]
        %v1876 = vld [vmem:[%s1809 + $0x1a] sm:$0xff]
        %v1877 = vld [vmem:[%s1809 + $0x22] sm:$0xff]
        %v1878 = vld [vmem:[%s1809 + $0x32] sm:$0xff]
        %v1879 = vld [vmem:[%s1809 + $0x3a] sm:$0xff]
        %v1880 = vld [vmem:[%s1809 + $0x4a] sm:$0xff]
        %v1881 = vld [vmem:[%s1809 + $0x52] sm:$0xff]
        %v1882 = vld [vmem:[%s1809 + $0x62] sm:$0xff]
        %v1883 = vld [vmem:[%s1809 + $0x6a] sm:$0xff]
        %v1884 = vld [vmem:[%s1809 + $0x7a] sm:$0xff]
        %v1885 = vld [vmem:[%s1809 + $0x82] sm:$0xff]
        %v1886 = vld [vmem:[%s1809 + $0x92] sm:$0xff]
        %v1887 = vld [vmem:[%s1809 + $0x9a] sm:$0xff]
        %v1888 = vld [vmem:[%s1809 + $0xaa] sm:$0xff]
        %v1889 = vld [vmem:[%s1809 + $0xb2] sm:$0xff]
        %v1890 = vld [vmem:[%s1809 + $0xc2] sm:$0xff]
        %v1891 = vld [vmem:[%s1809 + $0xca] sm:$0xff]
        %v1892 = vld [vmem:[%s1809 + $0xda] sm:$0xff]
        %v1893 = vld [vmem:[%s1809 + $0xe2] sm:$0xff]
        %v1894 = vld [vmem:[%s1809 + $0xf2] sm:$0xff]
        %v1895 = vld [vmem:[%s1809 + $0xfa] sm:$0xff]
        %v1896 = vld [vmem:[%s1809 + $0x10a] sm:$0xff]
        %v1897 = vld [vmem:[%s1809 + $0x112] sm:$0xff]
        %v1898 = vld [vmem:[%s1809 + $0x122] sm:$0xff]
        %v1899 = vld [vmem:[%s1809 + $0x12a] sm:$0xff]
        %v1900 = vld [vmem:[%s1809 + $0x13a] sm:$0xff]
        %v1901 = vld [vmem:[%s1809 + $0x142] sm:$0xff]
        %v1902 = vld [vmem:[%s1809 + $0x152] sm:$0xff]
        %v1903 = vld [vmem:[%s1809 + $0x15a] sm:$0xff]
        %v1904 = vld [vmem:[%s1809 + $0x16a] sm:$0xff]
        %v1905 = vld [vmem:[%s1809 + $0x172] sm:$0xff]
        %1938 = vrot.lane.b32.xlu0 %v1842, 3
        %v1939 = vpop.permute.xlu0 %1938
        %1940 = vrot.lane.b32.xlu0 %v1843, 3
        %v1941 = vpop.permute.xlu0 %1940
        %1942 = vrot.lane.b32.xlu0 %v1844, 3
        %v1943 = vpop.permute.xlu0 %1942
        %1944 = vrot.lane.b32.xlu0 %v1845, 3
        %v1945 = vpop.permute.xlu0 %1944
        %1946 = vrot.lane.b32.xlu0 %v1846, 3
        %v1947 = vpop.permute.xlu0 %1946
        %1948 = vrot.lane.b32.xlu0 %v1847, 3
        %v1949 = vpop.permute.xlu0 %1948
        %1950 = vrot.lane.b32.xlu0 %v1848, 3
        %v1951 = vpop.permute.xlu0 %1950
        %1952 = vrot.lane.b32.xlu0 %v1849, 3
        %v1953 = vpop.permute.xlu0 %1952
        %1954 = vrot.lane.b32.xlu0 %v1850, 3
        %v1955 = vpop.permute.xlu0 %1954
        %1956 = vrot.lane.b32.xlu0 %v1851, 3
        %v1957 = vpop.permute.xlu0 %1956
        %1958 = vrot.lane.b32.xlu0 %v1852, 3
        %v1959 = vpop.permute.xlu0 %1958
        %1960 = vrot.lane.b32.xlu0 %v1853, 3
        %v1961 = vpop.permute.xlu0 %1960
        %1962 = vrot.lane.b32.xlu0 %v1854, 3
        %v1963 = vpop.permute.xlu0 %1962
        %1964 = vrot.lane.b32.xlu0 %v1855, 3
        %v1965 = vpop.permute.xlu0 %1964
        %1966 = vrot.lane.b32.xlu0 %v1856, 3
        %v1967 = vpop.permute.xlu0 %1966
        %1968 = vrot.lane.b32.xlu0 %v1857, 3
        %v1969 = vpop.permute.xlu0 %1968
        %1970 = vrot.lane.b32.xlu0 %v1858, 3
        %v1971 = vpop.permute.xlu0 %1970
        %1972 = vrot.lane.b32.xlu0 %v1859, 3
        %v1973 = vpop.permute.xlu0 %1972
        %1974 = vrot.lane.b32.xlu0 %v1860, 3
        %v1975 = vpop.permute.xlu0 %1974
        %1976 = vrot.lane.b32.xlu0 %v1861, 3
        %v1977 = vpop.permute.xlu0 %1976
        %1978 = vrot.lane.b32.xlu0 %v1862, 3
        %v1979 = vpop.permute.xlu0 %1978
        %1980 = vrot.lane.b32.xlu0 %v1863, 3
        %v1981 = vpop.permute.xlu0 %1980
        %1982 = vrot.lane.b32.xlu0 %v1864, 3
        %v1983 = vpop.permute.xlu0 %1982
        %1984 = vrot.lane.b32.xlu0 %v1865, 3
        %v1985 = vpop.permute.xlu0 %1984
        %1986 = vrot.lane.b32.xlu0 %v1866, 3
        %v1987 = vpop.permute.xlu0 %1986
        %1988 = vrot.lane.b32.xlu0 %v1867, 3
        %v1989 = vpop.permute.xlu0 %1988
        %1990 = vrot.lane.b32.xlu0 %v1868, 3
        %v1991 = vpop.permute.xlu0 %1990
        %1992 = vrot.lane.b32.xlu0 %v1869, 3
        %v1993 = vpop.permute.xlu0 %1992
        %1994 = vrot.lane.b32.xlu0 %v1870, 3
        %v1995 = vpop.permute.xlu0 %1994
        %1996 = vrot.lane.b32.xlu0 %v1871, 3
        %v1997 = vpop.permute.xlu0 %1996
        %1998 = vrot.lane.b32.xlu0 %v1872, 3
        %v1999 = vpop.permute.xlu0 %1998
        %2000 = vrot.lane.b32.xlu0 %v1873, 3
        %v2001 = vpop.permute.xlu0 %2000
        %2066 = vrot.lane.b32.xlu0 %v1874, 6
        %v2067 = vpop.permute.xlu0 %2066
        %2068 = vrot.lane.b32.xlu0 %v1875, 6
        %v2069 = vpop.permute.xlu0 %2068
        %2070 = vrot.lane.b32.xlu0 %v1876, 6
        %v2071 = vpop.permute.xlu0 %2070
        %2072 = vrot.lane.b32.xlu0 %v1877, 6
        %v2073 = vpop.permute.xlu0 %2072
        %2074 = vrot.lane.b32.xlu0 %v1878, 6
        %v2075 = vpop.permute.xlu0 %2074
        %2076 = vrot.lane.b32.xlu0 %v1879, 6
        %v2077 = vpop.permute.xlu0 %2076
        %2078 = vrot.lane.b32.xlu0 %v1880, 6
        %v2079 = vpop.permute.xlu0 %2078
        %2080 = vrot.lane.b32.xlu0 %v1881, 6
        %v2081 = vpop.permute.xlu0 %2080
        %2082 = vrot.lane.b32.xlu0 %v1882, 6
        %v2083 = vpop.permute.xlu0 %2082
        %2084 = vrot.lane.b32.xlu0 %v1883, 6
        %v2085 = vpop.permute.xlu0 %2084
        %2086 = vrot.lane.b32.xlu0 %v1884, 6
        %v2087 = vpop.permute.xlu0 %2086
        %2088 = vrot.lane.b32.xlu0 %v1885, 6
        %v2089 = vpop.permute.xlu0 %2088
        %2090 = vrot.lane.b32.xlu0 %v1886, 6
        %v2091 = vpop.permute.xlu0 %2090
        %2092 = vrot.lane.b32.xlu0 %v1887, 6
        %v2093 = vpop.permute.xlu0 %2092
        %2094 = vrot.lane.b32.xlu0 %v1888, 6
        %v2095 = vpop.permute.xlu0 %2094
        %2096 = vrot.lane.b32.xlu0 %v1889, 6
        %v2097 = vpop.permute.xlu0 %2096
        %2098 = vrot.lane.b32.xlu0 %v1890, 6
        %v2099 = vpop.permute.xlu0 %2098
        %2100 = vrot.lane.b32.xlu0 %v1891, 6
        %v2101 = vpop.permute.xlu0 %2100
        %2102 = vrot.lane.b32.xlu0 %v1892, 6
        %v2103 = vpop.permute.xlu0 %2102
        %2104 = vrot.lane.b32.xlu0 %v1893, 6
        %v2105 = vpop.permute.xlu0 %2104
        %2106 = vrot.lane.b32.xlu0 %v1894, 6
        %v2107 = vpop.permute.xlu0 %2106
        %2108 = vrot.lane.b32.xlu0 %v1895, 6
        %v2109 = vpop.permute.xlu0 %2108
        %2110 = vrot.lane.b32.xlu0 %v1896, 6
        %v2111 = vpop.permute.xlu0 %2110
        %2112 = vrot.lane.b32.xlu0 %v1897, 6
        %v2113 = vpop.permute.xlu0 %2112
        %2114 = vrot.lane.b32.xlu0 %v1898, 6
        %v2115 = vpop.permute.xlu0 %2114
        %2116 = vrot.lane.b32.xlu0 %v1899, 6
        %v2117 = vpop.permute.xlu0 %2116
        %2118 = vrot.lane.b32.xlu0 %v1900, 6
        %v2119 = vpop.permute.xlu0 %2118
        %2120 = vrot.lane.b32.xlu0 %v1901, 6
        %v2121 = vpop.permute.xlu0 %2120
        %2122 = vrot.lane.b32.xlu0 %v1902, 6
        %v2123 = vpop.permute.xlu0 %2122
        %2124 = vrot.lane.b32.xlu0 %v1903, 6
        %v2125 = vpop.permute.xlu0 %2124
        %2126 = vrot.lane.b32.xlu0 %v1904, 6
        %v2127 = vpop.permute.xlu0 %2126
        %2128 = vrot.lane.b32.xlu0 %v1905, 6
        %v2129 = vpop.permute.xlu0 %2128
        %v2162 = vsel %vm218, %v1810, %v1939
        %v2163 = vsel %vm218, %v1811, %v1941
        %v2164 = vsel %vm218, %v1812, %v1943
        %v2165 = vsel %vm218, %v1813, %v1945
        %v2166 = vsel %vm218, %v1814, %v1947
        %v2167 = vsel %vm218, %v1815, %v1949
        %v2168 = vsel %vm218, %v1816, %v1951
        %v2169 = vsel %vm218, %v1817, %v1953
        %v2170 = vsel %vm218, %v1818, %v1955
        %v2171 = vsel %vm218, %v1819, %v1957
        %v2172 = vsel %vm218, %v1820, %v1959
        %v2173 = vsel %vm218, %v1821, %v1961
        %v2174 = vsel %vm218, %v1822, %v1963
        %v2175 = vsel %vm218, %v1823, %v1965
        %v2176 = vsel %vm218, %v1824, %v1967
        %v2177 = vsel %vm218, %v1825, %v1969
        %v2178 = vsel %vm218, %v1826, %v1971
        %v2179 = vsel %vm218, %v1827, %v1973
        %v2180 = vsel %vm218, %v1828, %v1975
        %v2181 = vsel %vm218, %v1829, %v1977
        %v2182 = vsel %vm218, %v1830, %v1979
        %v2183 = vsel %vm218, %v1831, %v1981
        %v2184 = vsel %vm218, %v1832, %v1983
        %v2185 = vsel %vm218, %v1833, %v1985
        %v2186 = vsel %vm218, %v1834, %v1987
        %v2187 = vsel %vm218, %v1835, %v1989
        %v2188 = vsel %vm218, %v1836, %v1991
        %v2189 = vsel %vm218, %v1837, %v1993
        %v2190 = vsel %vm218, %v1838, %v1995
        %v2191 = vsel %vm218, %v1839, %v1997
        %v2192 = vsel %vm218, %v1840, %v1999
        %v2193 = vsel %vm218, %v1841, %v2001
        %v2194 = vsel %vm755, %v2162, %v2067
        %v2195 = vsel %vm755, %v2163, %v2069
        %v2196 = vsel %vm755, %v2164, %v2071
        %v2197 = vsel %vm755, %v2165, %v2073
        %v2198 = vsel %vm755, %v2166, %v2075
        %v2199 = vsel %vm755, %v2167, %v2077
        %v2200 = vsel %vm755, %v2168, %v2079
        %v2201 = vsel %vm755, %v2169, %v2081
        %v2202 = vsel %vm755, %v2170, %v2083
        %v2203 = vsel %vm755, %v2171, %v2085
        %v2204 = vsel %vm755, %v2172, %v2087
        %v2205 = vsel %vm755, %v2173, %v2089
        %v2206 = vsel %vm755, %v2174, %v2091
        %v2207 = vsel %vm755, %v2175, %v2093
        %v2208 = vsel %vm755, %v2176, %v2095
        %v2209 = vsel %vm755, %v2177, %v2097
        %v2210 = vsel %vm755, %v2178, %v2099
        %v2211 = vsel %vm755, %v2179, %v2101
        %v2212 = vsel %vm755, %v2180, %v2103
        %v2213 = vsel %vm755, %v2181, %v2105
        %v2214 = vsel %vm755, %v2182, %v2107
        %v2215 = vsel %vm755, %v2183, %v2109
        %v2216 = vsel %vm755, %v2184, %v2111
        %v2217 = vsel %vm755, %v2185, %v2113
        %v2218 = vsel %vm755, %v2186, %v2115
        %v2219 = vsel %vm755, %v2187, %v2117
        %v2220 = vsel %vm755, %v2188, %v2119
        %v2221 = vsel %vm755, %v2189, %v2121
        %v2222 = vsel %vm755, %v2190, %v2123
        %v2223 = vsel %vm755, %v2191, %v2125
        %v2224 = vsel %vm755, %v2192, %v2127
        %v2225 = vsel %vm755, %v2193, %v2129
        %v2226 = vpack.c.bf16 %v2195, %v2194
        %v2227 = vpack.c.bf16 %v2197, %v2196
        %v2228 = vpack.c.bf16 %v2199, %v2198
        %v2229 = vpack.c.bf16 %v2201, %v2200
        %v2230 = vpack.c.bf16 %v2203, %v2202
        %v2231 = vpack.c.bf16 %v2205, %v2204
        %v2232 = vpack.c.bf16 %v2207, %v2206
        %v2233 = vpack.c.bf16 %v2209, %v2208
        %v2234 = vpack.c.bf16 %v2211, %v2210
        %v2235 = vpack.c.bf16 %v2213, %v2212
        %v2236 = vpack.c.bf16 %v2215, %v2214
        %v2237 = vpack.c.bf16 %v2217, %v2216
        %v2238 = vpack.c.bf16 %v2219, %v2218
        %v2239 = vpack.c.bf16 %v2221, %v2220
        %v2240 = vpack.c.bf16 %v2223, %v2222
        %v2241 = vpack.c.bf16 %v2225, %v2224
        %s2242 = scalar_lea.vmem %s1, 16
        %v2243 = vld [vmem:[%s2242] sm:$0xf]
        %v2244 = vld [vmem:[%s2242 + $0x4] sm:$0x1]
        %v2247 = vunpack.c.l.b16 %v2243
        %v2248 = vunpack.c.l.b16 %v2244
        %v2249 = vpack.c.b16 %v2248, %v2247
        %v2251 = vsel %vm811, %v2226, 0
        %v2254 = vsel %vm811, %v2227, 0
        %v2257 = vsel %vm811, %v2228, 0
        %v2260 = vsel %vm811, %v2229, 0
        %v2263 = vsel %vm811, %v2230, 0
        %v2266 = vsel %vm811, %v2231, 0
        %v2269 = vsel %vm811, %v2232, 0
        %v2272 = vsel %vm811, %v2233, 0
        %v2275 = vsel %vm811, %v2234, 0
        %v2278 = vsel %vm811, %v2235, 0
        %v2281 = vsel %vm811, %v2236, 0
        %v2284 = vsel %vm811, %v2237, 0
        %v2287 = vsel %vm811, %v2238, 0
        %v2290 = vsel %vm811, %v2239, 0
        %v2293 = vsel %vm811, %v2240, 0
        %v2296 = vsel %vm811, %v2241, 0
        %v2299 = vand.u32 %v2249, %v863
        %2301 = vmatprep.subr.bf16.mxu0 0
        %2302 = vmatpush1.bf16.msra.mxu0 0
        %2303 = vmatprep.subr.bf16.mxu0 0
        %2304 = vmatpush1.bf16.msra.mxu0 0
        %2305 = vmatprep.subr.bf16.mxu0 0
        %2306 = vmatpush1.bf16.msra.mxu0 0
        %2307 = vmatprep.subr.bf16.mxu0 0
        %2308 = vmatpush1.bf16.msra.mxu0 0
        %2309 = vmatprep.subr.bf16.mxu0 0
        %2310 = vmatpush1.bf16.msra.mxu0 0
        %2311 = vmatprep.subr.bf16.mxu0 0
        %2312 = vmatpush1.bf16.msra.mxu0 0
        %2313 = vmatprep.subr.bf16.mxu0 0
        %2314 = vmatpush1.bf16.msra.mxu0 0
        %2315 = vmatprep.subr.bf16.mxu0 0
        %2316 = vmatpush1.bf16.msra.mxu0 %v2299
        %2317 = vmatprep.subr.bf16.mxu0 0
        %2318 = vmatpush2.bf16.msra.mxu0 0
        %2319 = vmatprep.subr.bf16.mxu0 0
        %2320 = vmatpush2.bf16.msra.mxu0 0
        %2321 = vmatprep.subr.bf16.mxu0 0
        %2322 = vmatpush2.bf16.msra.mxu0 0
        %2323 = vmatprep.subr.bf16.mxu0 0
        %2324 = vmatpush2.bf16.msra.mxu0 0
        %2325 = vmatprep.subr.bf16.mxu0 0
        %2326 = vmatpush2.bf16.msra.mxu0 0
        %2327 = vmatprep.subr.bf16.mxu0 0
        %2328 = vmatpush2.bf16.msra.mxu0 0
        %2329 = vmatprep.subr.bf16.mxu0 0
        %2330 = vmatpush2.bf16.msra.mxu0 0
        %2331 = vmatprep.subr.bf16.mxu0 0
        %2332 = vmatpush2.bf16.msra.mxu0 0
        %2333 = vmatprep.mubr.bf16.mxu0 0
        %2334 = vmatmul.mubr.bf16.gmra.mxu0 %v2251
        %v2335 = vpop.f32.mrf.mxu0
        %v2336 = vadd.f32 0.0, %v2335
        %v2337 = vpop.f32.mrf.mxu0
        %v2338 = vpop.f32.mrf.mxu0
        %v2339 = vadd.f32 0.0, %v2338
        %v2340 = vpop.f32.mrf.mxu0
        %2341 = vmatprep.mubr.bf16.mxu0 0
        %2342 = vmatmul.mubr.bf16.gmra.mxu0 %v2254
        %v2343 = vpop.f32.mrf.mxu0
        %v2344 = vadd.f32 0.0, %v2343
        %v2345 = vpop.f32.mrf.mxu0
        %v2346 = vpop.f32.mrf.mxu0
        %v2347 = vadd.f32 0.0, %v2346
        %v2348 = vpop.f32.mrf.mxu0
        %2349 = vmatprep.mubr.bf16.mxu0 0
        %2350 = vmatmul.mubr.bf16.gmra.mxu0 %v2257
        %v2351 = vpop.f32.mrf.mxu0
        %v2352 = vadd.f32 0.0, %v2351
        %v2353 = vpop.f32.mrf.mxu0
        %v2354 = vpop.f32.mrf.mxu0
        %v2355 = vadd.f32 0.0, %v2354
        %v2356 = vpop.f32.mrf.mxu0
        %2357 = vmatprep.mubr.bf16.mxu0 0
        %2358 = vmatmul.mubr.bf16.gmra.mxu0 %v2260
        %v2359 = vpop.f32.mrf.mxu0
        %v2360 = vadd.f32 0.0, %v2359
        %v2361 = vpop.f32.mrf.mxu0
        %v2362 = vpop.f32.mrf.mxu0
        %v2363 = vadd.f32 0.0, %v2362
        %v2364 = vpop.f32.mrf.mxu0
        %2365 = vmatprep.mubr.bf16.mxu0 0
        %2366 = vmatmul.mubr.bf16.gmra.mxu0 %v2263
        %v2367 = vpop.f32.mrf.mxu0
        %v2368 = vadd.f32 0.0, %v2367
        %v2369 = vpop.f32.mrf.mxu0
        %v2370 = vpop.f32.mrf.mxu0
        %v2371 = vadd.f32 0.0, %v2370
        %v2372 = vpop.f32.mrf.mxu0
        %2373 = vmatprep.mubr.bf16.mxu0 0
        %2374 = vmatmul.mubr.bf16.gmra.mxu0 %v2266
        %v2375 = vpop.f32.mrf.mxu0
        %v2376 = vadd.f32 0.0, %v2375
        %v2377 = vpop.f32.mrf.mxu0
        %v2378 = vpop.f32.mrf.mxu0
        %v2379 = vadd.f32 0.0, %v2378
        %v2380 = vpop.f32.mrf.mxu0
        %2381 = vmatprep.mubr.bf16.mxu0 0
        %2382 = vmatmul.mubr.bf16.gmra.mxu0 %v2269
        %v2383 = vpop.f32.mrf.mxu0
        %v2384 = vadd.f32 0.0, %v2383
        %v2385 = vpop.f32.mrf.mxu0
        %v2386 = vpop.f32.mrf.mxu0
        %v2387 = vadd.f32 0.0, %v2386
        %v2388 = vpop.f32.mrf.mxu0
        %2389 = vmatprep.mubr.bf16.mxu0 0
        %2390 = vmatmul.mubr.bf16.gmra.mxu0 %v2272
        %v2391 = vpop.f32.mrf.mxu0
        %v2392 = vadd.f32 0.0, %v2391
        %v2393 = vpop.f32.mrf.mxu0
        %v2394 = vpop.f32.mrf.mxu0
        %v2395 = vadd.f32 0.0, %v2394
        %v2396 = vpop.f32.mrf.mxu0
        %2397 = vmatprep.mubr.bf16.mxu0 0
        %2398 = vmatmul.mubr.bf16.gmra.mxu0 %v2275
        %v2399 = vpop.f32.mrf.mxu0
        %v2400 = vadd.f32 0.0, %v2399
        %v2401 = vpop.f32.mrf.mxu0
        %v2402 = vpop.f32.mrf.mxu0
        %v2403 = vadd.f32 0.0, %v2402
        %v2404 = vpop.f32.mrf.mxu0
        %2405 = vmatprep.mubr.bf16.mxu0 0
        %2406 = vmatmul.mubr.bf16.gmra.mxu0 %v2278
        %v2407 = vpop.f32.mrf.mxu0
        %v2408 = vadd.f32 0.0, %v2407
        %v2409 = vpop.f32.mrf.mxu0
        %v2410 = vpop.f32.mrf.mxu0
        %v2411 = vadd.f32 0.0, %v2410
        %v2412 = vpop.f32.mrf.mxu0
        %2413 = vmatprep.mubr.bf16.mxu0 0
        %2414 = vmatmul.mubr.bf16.gmra.mxu0 %v2281
        %v2415 = vpop.f32.mrf.mxu0
        %v2416 = vadd.f32 0.0, %v2415
        %v2417 = vpop.f32.mrf.mxu0
        %v2418 = vpop.f32.mrf.mxu0
        %v2419 = vadd.f32 0.0, %v2418
        %v2420 = vpop.f32.mrf.mxu0
        %2421 = vmatprep.mubr.bf16.mxu0 0
        %2422 = vmatmul.mubr.bf16.gmra.mxu0 %v2284
        %v2423 = vpop.f32.mrf.mxu0
        %v2424 = vadd.f32 0.0, %v2423
        %v2425 = vpop.f32.mrf.mxu0
        %v2426 = vpop.f32.mrf.mxu0
        %v2427 = vadd.f32 0.0, %v2426
        %v2428 = vpop.f32.mrf.mxu0
        %2429 = vmatprep.mubr.bf16.mxu0 0
        %2430 = vmatmul.mubr.bf16.gmra.mxu0 %v2287
        %v2431 = vpop.f32.mrf.mxu0
        %v2432 = vadd.f32 0.0, %v2431
        %v2433 = vpop.f32.mrf.mxu0
        %v2434 = vpop.f32.mrf.mxu0
        %v2435 = vadd.f32 0.0, %v2434
        %v2436 = vpop.f32.mrf.mxu0
        %2437 = vmatprep.mubr.bf16.mxu0 0
        %2438 = vmatmul.mubr.bf16.gmra.mxu0 %v2290
        %v2439 = vpop.f32.mrf.mxu0
        %v2440 = vadd.f32 0.0, %v2439
        %v2441 = vpop.f32.mrf.mxu0
        %v2442 = vpop.f32.mrf.mxu0
        %v2443 = vadd.f32 0.0, %v2442
        %v2444 = vpop.f32.mrf.mxu0
        %2445 = vmatprep.mubr.bf16.mxu0 0
        %2446 = vmatmul.mubr.bf16.gmra.mxu0 %v2293
        %v2447 = vpop.f32.mrf.mxu0
        %v2448 = vadd.f32 0.0, %v2447
        %v2449 = vpop.f32.mrf.mxu0
        %v2450 = vpop.f32.mrf.mxu0
        %v2451 = vadd.f32 0.0, %v2450
        %v2452 = vpop.f32.mrf.mxu0
        %2453 = vmatprep.mubr.bf16.mxu0 0
        %2454 = vmatmul.mubr.bf16.gmra.mxu0 %v2296
        %v2455 = vpop.f32.mrf.mxu0
        %v2456 = vadd.f32 0.0, %v2455
        %v2457 = vpop.f32.mrf.mxu0
        %v2458 = vpop.f32.mrf.mxu0
        %v2459 = vadd.f32 0.0, %v2458
        %v2460 = vpop.f32.mrf.mxu0
        %2461 = vdwg.mxu0
        %v2462 = vld [vmem:[%s216] sm:$0xff]
        %v2463 = vld [vmem:[%s216 + $0x8] sm:$0xff]
        %v2464 = vld [vmem:[%s216 + $0x10] sm:$0xff]
        %v2465 = vld [vmem:[%s216 + $0x18] sm:$0xff]
        %v2466 = vld [vmem:[%s216 + $0x20] sm:$0xff]
        %v2467 = vld [vmem:[%s216 + $0x28] sm:$0xff]
        %v2468 = vld [vmem:[%s216 + $0x30] sm:$0xff]
        %v2469 = vld [vmem:[%s216 + $0x38] sm:$0xff]
        %v2470 = vld [vmem:[%s216 + $0x40] sm:$0xff]
        %v2471 = vld [vmem:[%s216 + $0x48] sm:$0xff]
        %v2472 = vld [vmem:[%s216 + $0x50] sm:$0xff]
        %v2473 = vld [vmem:[%s216 + $0x58] sm:$0xff]
        %v2474 = vld [vmem:[%s216 + $0x60] sm:$0xff]
        %v2475 = vld [vmem:[%s216 + $0x68] sm:$0xff]
        %v2476 = vld [vmem:[%s216 + $0x70] sm:$0xff]
        %v2477 = vld [vmem:[%s216 + $0x78] sm:$0xff]
        %v2478 = vld [vmem:[%s216 + $0x80] sm:$0xff]
        %v2479 = vld [vmem:[%s216 + $0x88] sm:$0xff]
        %v2480 = vld [vmem:[%s216 + $0x90] sm:$0xff]
        %v2481 = vld [vmem:[%s216 + $0x98] sm:$0xff]
        %v2482 = vld [vmem:[%s216 + $0xa0] sm:$0xff]
        %v2483 = vld [vmem:[%s216 + $0xa8] sm:$0xff]
        %v2484 = vld [vmem:[%s216 + $0xb0] sm:$0xff]
        %v2485 = vld [vmem:[%s216 + $0xb8] sm:$0xff]
        %v2486 = vld [vmem:[%s216 + $0xc0] sm:$0xff]
        %v2487 = vld [vmem:[%s216 + $0xc8] sm:$0xff]
        %v2488 = vld [vmem:[%s216 + $0xd0] sm:$0xff]
        %v2489 = vld [vmem:[%s216 + $0xd8] sm:$0xff]
        %v2490 = vld [vmem:[%s216 + $0xe0] sm:$0xff]
        %v2491 = vld [vmem:[%s216 + $0xe8] sm:$0xff]
        %v2492 = vld [vmem:[%s216 + $0xf0] sm:$0xff]
        %v2493 = vld [vmem:[%s216 + $0xf8] sm:$0xff]
        %v2494 = vadd.f32 %v2462, %v2336
        %v2495 = vadd.f32 %v2463, %v2339
        %v2496 = vadd.f32 %v2464, %v2344
        %v2497 = vadd.f32 %v2465, %v2347
        %v2498 = vadd.f32 %v2466, %v2352
        %v2499 = vadd.f32 %v2467, %v2355
        %v2500 = vadd.f32 %v2468, %v2360
        %v2501 = vadd.f32 %v2469, %v2363
        %v2502 = vadd.f32 %v2470, %v2368
        %v2503 = vadd.f32 %v2471, %v2371
        %v2504 = vadd.f32 %v2472, %v2376
        %v2505 = vadd.f32 %v2473, %v2379
        %v2506 = vadd.f32 %v2474, %v2384
        %v2507 = vadd.f32 %v2475, %v2387
        %v2508 = vadd.f32 %v2476, %v2392
        %v2509 = vadd.f32 %v2477, %v2395
        %v2510 = vadd.f32 %v2478, %v2400
        %v2511 = vadd.f32 %v2479, %v2403
        %v2512 = vadd.f32 %v2480, %v2408
        %v2513 = vadd.f32 %v2481, %v2411
        %v2514 = vadd.f32 %v2482, %v2416
        %v2515 = vadd.f32 %v2483, %v2419
        %v2516 = vadd.f32 %v2484, %v2424
        %v2517 = vadd.f32 %v2485, %v2427
        %v2518 = vadd.f32 %v2486, %v2432
        %v2519 = vadd.f32 %v2487, %v2435
        %v2520 = vadd.f32 %v2488, %v2440
        %v2521 = vadd.f32 %v2489, %v2443
        %v2522 = vadd.f32 %v2490, %v2448
        %v2523 = vadd.f32 %v2491, %v2451
        %v2524 = vadd.f32 %v2492, %v2456
        %v2525 = vadd.f32 %v2493, %v2459
        %2526 = vst.msk [vmem:[%s216] sm:$0xff] %vm1028, %v2494
        %2527 = vst.msk [vmem:[%s216 + $0x8] sm:$0xff] %vm1028, %v2495
        %2528 = vst.msk [vmem:[%s216 + $0x10] sm:$0xff] %vm1028, %v2496
        %2529 = vst.msk [vmem:[%s216 + $0x18] sm:$0xff] %vm1028, %v2497
        %2530 = vst.msk [vmem:[%s216 + $0x20] sm:$0xff] %vm1028, %v2498
        %2531 = vst.msk [vmem:[%s216 + $0x28] sm:$0xff] %vm1028, %v2499
        %2532 = vst.msk [vmem:[%s216 + $0x30] sm:$0xff] %vm1028, %v2500
        %2533 = vst.msk [vmem:[%s216 + $0x38] sm:$0xff] %vm1028, %v2501
        %2534 = vst.msk [vmem:[%s216 + $0x40] sm:$0xff] %vm1028, %v2502
        %2535 = vst.msk [vmem:[%s216 + $0x48] sm:$0xff] %vm1028, %v2503
        %2536 = vst.msk [vmem:[%s216 + $0x50] sm:$0xff] %vm1028, %v2504
        %2537 = vst.msk [vmem:[%s216 + $0x58] sm:$0xff] %vm1028, %v2505
        %2538 = vst.msk [vmem:[%s216 + $0x60] sm:$0xff] %vm1028, %v2506
        %2539 = vst.msk [vmem:[%s216 + $0x68] sm:$0xff] %vm1028, %v2507
        %2540 = vst.msk [vmem:[%s216 + $0x70] sm:$0xff] %vm1028, %v2508
        %2541 = vst.msk [vmem:[%s216 + $0x78] sm:$0xff] %vm1028, %v2509
        %2542 = vst.msk [vmem:[%s216 + $0x80] sm:$0xff] %vm1028, %v2510
        %2543 = vst.msk [vmem:[%s216 + $0x88] sm:$0xff] %vm1028, %v2511
        %2544 = vst.msk [vmem:[%s216 + $0x90] sm:$0xff] %vm1028, %v2512
        %2545 = vst.msk [vmem:[%s216 + $0x98] sm:$0xff] %vm1028, %v2513
        %2546 = vst.msk [vmem:[%s216 + $0xa0] sm:$0xff] %vm1028, %v2514
        %2547 = vst.msk [vmem:[%s216 + $0xa8] sm:$0xff] %vm1028, %v2515
        %2548 = vst.msk [vmem:[%s216 + $0xb0] sm:$0xff] %vm1028, %v2516
        %2549 = vst.msk [vmem:[%s216 + $0xb8] sm:$0xff] %vm1028, %v2517
        %2550 = vst.msk [vmem:[%s216 + $0xc0] sm:$0xff] %vm1028, %v2518
        %2551 = vst.msk [vmem:[%s216 + $0xc8] sm:$0xff] %vm1028, %v2519
        %2552 = vst.msk [vmem:[%s216 + $0xd0] sm:$0xff] %vm1028, %v2520
        %2553 = vst.msk [vmem:[%s216 + $0xd8] sm:$0xff] %vm1028, %v2521
        %2554 = vst.msk [vmem:[%s216 + $0xe0] sm:$0xff] %vm1028, %v2522
        %2555 = vst.msk [vmem:[%s216 + $0xe8] sm:$0xff] %vm1028, %v2523
        %2556 = vst.msk [vmem:[%s216 + $0xf0] sm:$0xff] %vm1028, %v2524
        %2557 = vst.msk [vmem:[%s216 + $0xf8] sm:$0xff] %vm1028, %v2525
        %v2558 = vld [vmem:[%s216] sm:$0xff]
        %v2559 = vld [vmem:[%s216 + $0x8] sm:$0xff]
        %v2560 = vld [vmem:[%s216 + $0x10] sm:$0xff]
        %v2561 = vld [vmem:[%s216 + $0x18] sm:$0xff]
        %v2562 = vld [vmem:[%s216 + $0x20] sm:$0xff]
        %v2563 = vld [vmem:[%s216 + $0x28] sm:$0xff]
        %v2564 = vld [vmem:[%s216 + $0x30] sm:$0xff]
        %v2565 = vld [vmem:[%s216 + $0x38] sm:$0xff]
        %v2566 = vld [vmem:[%s216 + $0x40] sm:$0xff]
        %v2567 = vld [vmem:[%s216 + $0x48] sm:$0xff]
        %v2568 = vld [vmem:[%s216 + $0x50] sm:$0xff]
        %v2569 = vld [vmem:[%s216 + $0x58] sm:$0xff]
        %v2570 = vld [vmem:[%s216 + $0x60] sm:$0xff]
        %v2571 = vld [vmem:[%s216 + $0x68] sm:$0xff]
        %v2572 = vld [vmem:[%s216 + $0x70] sm:$0xff]
        %v2573 = vld [vmem:[%s216 + $0x78] sm:$0xff]
        %v2574 = vld [vmem:[%s216 + $0x80] sm:$0xff]
        %v2575 = vld [vmem:[%s216 + $0x88] sm:$0xff]
        %v2576 = vld [vmem:[%s216 + $0x90] sm:$0xff]
        %v2577 = vld [vmem:[%s216 + $0x98] sm:$0xff]
        %v2578 = vld [vmem:[%s216 + $0xa0] sm:$0xff]
        %v2579 = vld [vmem:[%s216 + $0xa8] sm:$0xff]
        %v2580 = vld [vmem:[%s216 + $0xb0] sm:$0xff]
        %v2581 = vld [vmem:[%s216 + $0xb8] sm:$0xff]
        %v2582 = vld [vmem:[%s216 + $0xc0] sm:$0xff]
        %v2583 = vld [vmem:[%s216 + $0xc8] sm:$0xff]
        %v2584 = vld [vmem:[%s216 + $0xd0] sm:$0xff]
        %v2585 = vld [vmem:[%s216 + $0xd8] sm:$0xff]
        %v2586 = vld [vmem:[%s216 + $0xe0] sm:$0xff]
        %v2587 = vld [vmem:[%s216 + $0xe8] sm:$0xff]
        %v2588 = vld [vmem:[%s216 + $0xf0] sm:$0xff]
        %v2589 = vld [vmem:[%s216 + $0xf8] sm:$0xff]
        %v2590 = vsel %vm1028, %v2558, 0.0
        %v2591 = vsel %vm1028, %v2559, 0.0
        %v2592 = vadd.f32 %v2590, %v2591
        %v2593 = vsel %vm1028, %v2560, 0.0
        %v2594 = vadd.f32 %v2592, %v2593
        %v2595 = vsel %vm1028, %v2561, 0.0
        %v2596 = vadd.f32 %v2594, %v2595
        %v2597 = vsel %vm1028, %v2562, 0.0
        %v2598 = vadd.f32 %v2596, %v2597
        %v2599 = vsel %vm1028, %v2563, 0.0
        %v2600 = vadd.f32 %v2598, %v2599
        %v2601 = vsel %vm1028, %v2564, 0.0
        %v2602 = vadd.f32 %v2600, %v2601
        %v2603 = vsel %vm1028, %v2565, 0.0
        %v2604 = vadd.f32 %v2602, %v2603
        %v2605 = vsel %vm1028, %v2566, 0.0
        %v2606 = vadd.f32 %v2604, %v2605
        %v2607 = vsel %vm1028, %v2567, 0.0
        %v2608 = vadd.f32 %v2606, %v2607
        %v2609 = vsel %vm1028, %v2568, 0.0
        %v2610 = vadd.f32 %v2608, %v2609
        %v2611 = vsel %vm1028, %v2569, 0.0
        %v2612 = vadd.f32 %v2610, %v2611
        %v2613 = vsel %vm1028, %v2570, 0.0
        %v2614 = vadd.f32 %v2612, %v2613
        %v2615 = vsel %vm1028, %v2571, 0.0
        %v2616 = vadd.f32 %v2614, %v2615
        %v2617 = vsel %vm1028, %v2572, 0.0
        %v2618 = vadd.f32 %v2616, %v2617
        %v2619 = vsel %vm1028, %v2573, 0.0
        %v2620 = vadd.f32 %v2618, %v2619
        %v2621 = vsel %vm1028, %v2574, 0.0
        %v2622 = vadd.f32 %v2620, %v2621
        %v2623 = vsel %vm1028, %v2575, 0.0
        %v2624 = vadd.f32 %v2622, %v2623
        %v2625 = vsel %vm1028, %v2576, 0.0
        %v2626 = vadd.f32 %v2624, %v2625
        %v2627 = vsel %vm1028, %v2577, 0.0
        %v2628 = vadd.f32 %v2626, %v2627
        %v2629 = vsel %vm1028, %v2578, 0.0
        %v2630 = vadd.f32 %v2628, %v2629
        %v2631 = vsel %vm1028, %v2579, 0.0
        %v2632 = vadd.f32 %v2630, %v2631
        %v2633 = vsel %vm1028, %v2580, 0.0
        %v2634 = vadd.f32 %v2632, %v2633
        %v2635 = vsel %vm1028, %v2581, 0.0
        %v2636 = vadd.f32 %v2634, %v2635
        %v2637 = vsel %vm1028, %v2582, 0.0
        %v2638 = vadd.f32 %v2636, %v2637
        %v2639 = vsel %vm1028, %v2583, 0.0
        %v2640 = vadd.f32 %v2638, %v2639
        %v2641 = vsel %vm1028, %v2584, 0.0
        %v2642 = vadd.f32 %v2640, %v2641
        %v2643 = vsel %vm1028, %v2585, 0.0
        %v2644 = vadd.f32 %v2642, %v2643
        %v2645 = vsel %vm1028, %v2586, 0.0
        %v2646 = vadd.f32 %v2644, %v2645
        %v2647 = vsel %vm1028, %v2587, 0.0
        %v2648 = vadd.f32 %v2646, %v2647
        %v2649 = vsel %vm1028, %v2588, 0.0
        %v2650 = vadd.f32 %v2648, %v2649
        %v2651 = vsel %vm1028, %v2589, 0.0
        %v2652 = vadd.f32 %v2650, %v2651
        %v2653 = vrot.slane %v2652, 4
        %v2654 = vadd.f32 %v2652, %v2653
        %v2655 = vrot.slane %v2654, 2
        %v2656 = vadd.f32 %v2654, %v2655
        %v2657 = vrot.slane %v2656, 1
        %v2658 = vadd.f32 %v2656, %v2657
        %vm2659 = vcmask 24576
        %2660 = vst.msk [vmem:[%s200] sm:$0x1] %vm2659, %v2658
        %v2661 = vmul.f32 %v2558, %v2558
        %v2662 = vmul.f32 %v2559, %v2559
        %v2663 = vmul.f32 %v2560, %v2560
        %v2664 = vmul.f32 %v2561, %v2561
        %v2665 = vmul.f32 %v2562, %v2562
        %v2666 = vmul.f32 %v2563, %v2563
        %v2667 = vmul.f32 %v2564, %v2564
        %v2668 = vmul.f32 %v2565, %v2565
        %v2669 = vmul.f32 %v2566, %v2566
        %v2670 = vmul.f32 %v2567, %v2567
        %v2671 = vmul.f32 %v2568, %v2568
        %v2672 = vmul.f32 %v2569, %v2569
        %v2673 = vmul.f32 %v2570, %v2570
        %v2674 = vmul.f32 %v2571, %v2571
        %v2675 = vmul.f32 %v2572, %v2572
        %v2676 = vmul.f32 %v2573, %v2573
        %v2677 = vmul.f32 %v2574, %v2574
        %v2678 = vmul.f32 %v2575, %v2575
        %v2679 = vmul.f32 %v2576, %v2576
        %v2680 = vmul.f32 %v2577, %v2577
        %v2681 = vmul.f32 %v2578, %v2578
        %v2682 = vmul.f32 %v2579, %v2579
        %v2683 = vmul.f32 %v2580, %v2580
        %v2684 = vmul.f32 %v2581, %v2581
        %v2685 = vmul.f32 %v2582, %v2582
        %v2686 = vmul.f32 %v2583, %v2583
        %v2687 = vmul.f32 %v2584, %v2584
        %v2688 = vmul.f32 %v2585, %v2585
        %v2689 = vmul.f32 %v2586, %v2586
        %v2690 = vmul.f32 %v2587, %v2587
        %v2691 = vmul.f32 %v2588, %v2588
        %v2692 = vmul.f32 %v2589, %v2589
        %v2693 = vsel %vm1028, %v2661, 0.0
        %v2694 = vsel %vm1028, %v2662, 0.0
        %v2695 = vadd.f32 %v2693, %v2694
        %v2696 = vsel %vm1028, %v2663, 0.0
        %v2697 = vadd.f32 %v2695, %v2696
        %v2698 = vsel %vm1028, %v2664, 0.0
        %v2699 = vadd.f32 %v2697, %v2698
        %v2700 = vsel %vm1028, %v2665, 0.0
        %v2701 = vadd.f32 %v2699, %v2700
        %v2702 = vsel %vm1028, %v2666, 0.0
        %v2703 = vadd.f32 %v2701, %v2702
        %v2704 = vsel %vm1028, %v2667, 0.0
        %v2705 = vadd.f32 %v2703, %v2704
        %v2706 = vsel %vm1028, %v2668, 0.0
        %v2707 = vadd.f32 %v2705, %v2706
        %v2708 = vsel %vm1028, %v2669, 0.0
        %v2709 = vadd.f32 %v2707, %v2708
        %v2710 = vsel %vm1028, %v2670, 0.0
        %v2711 = vadd.f32 %v2709, %v2710
        %v2712 = vsel %vm1028, %v2671, 0.0
        %v2713 = vadd.f32 %v2711, %v2712
        %v2714 = vsel %vm1028, %v2672, 0.0
        %v2715 = vadd.f32 %v2713, %v2714
        %v2716 = vsel %vm1028, %v2673, 0.0
        %v2717 = vadd.f32 %v2715, %v2716
        %v2718 = vsel %vm1028, %v2674, 0.0
        %v2719 = vadd.f32 %v2717, %v2718
        %v2720 = vsel %vm1028, %v2675, 0.0
        %v2721 = vadd.f32 %v2719, %v2720
        %v2722 = vsel %vm1028, %v2676, 0.0
        %v2723 = vadd.f32 %v2721, %v2722
        %v2724 = vsel %vm1028, %v2677, 0.0
        %v2725 = vadd.f32 %v2723, %v2724
        %v2726 = vsel %vm1028, %v2678, 0.0
        %v2727 = vadd.f32 %v2725, %v2726
        %v2728 = vsel %vm1028, %v2679, 0.0
        %v2729 = vadd.f32 %v2727, %v2728
        %v2730 = vsel %vm1028, %v2680, 0.0
        %v2731 = vadd.f32 %v2729, %v2730
        %v2732 = vsel %vm1028, %v2681, 0.0
        %v2733 = vadd.f32 %v2731, %v2732
        %v2734 = vsel %vm1028, %v2682, 0.0
        %v2735 = vadd.f32 %v2733, %v2734
        %v2736 = vsel %vm1028, %v2683, 0.0
        %v2737 = vadd.f32 %v2735, %v2736
        %v2738 = vsel %vm1028, %v2684, 0.0
        %v2739 = vadd.f32 %v2737, %v2738
        %v2740 = vsel %vm1028, %v2685, 0.0
        %v2741 = vadd.f32 %v2739, %v2740
        %v2742 = vsel %vm1028, %v2686, 0.0
        %v2743 = vadd.f32 %v2741, %v2742
        %v2744 = vsel %vm1028, %v2687, 0.0
        %v2745 = vadd.f32 %v2743, %v2744
        %v2746 = vsel %vm1028, %v2688, 0.0
        %v2747 = vadd.f32 %v2745, %v2746
        %v2748 = vsel %vm1028, %v2689, 0.0
        %v2749 = vadd.f32 %v2747, %v2748
        %v2750 = vsel %vm1028, %v2690, 0.0
        %v2751 = vadd.f32 %v2749, %v2750
        %v2752 = vsel %vm1028, %v2691, 0.0
        %v2753 = vadd.f32 %v2751, %v2752
        %v2754 = vsel %vm1028, %v2692, 0.0
        %v2755 = vadd.f32 %v2753, %v2754
        %v2756 = vrot.slane %v2755, 4
        %v2757 = vadd.f32 %v2755, %v2756
        %v2758 = vrot.slane %v2757, 2
        %v2759 = vadd.f32 %v2757, %v2758
        %v2760 = vrot.slane %v2759, 1
        %v2761 = vadd.f32 %v2759, %v2760
        %2762 = vst.msk [vmem:[%s206] sm:$0x1] %vm2659, %v2761
        %p2763 = scmp.lt.s32.totalorder %s22, 1
        %s2764 = scalar_select %p2763, %s22, 1
        %s2765 = smul.addr %s2764, 32
        %s2766 = smul.addr %s2765, 8
        %s2767 = scalar_lea.vmem %s2, %s2766
        %s2768 = sand.u32 %s103, 1
        %s2769 = scalar_lea.sflag [#allocation4], %s2768
        %s2770 = sand.u32 %s103, 1
        %s2771 = scalar_lea.vmem [#allocation3], %s2770
        %s2772 = sand.u32 %s129, 1
        %s2773 = scalar_lea.sflag [#allocation6], %s2772
        %s2774 = sand.u32 %s129, 1
        %s2775 = scalar_lea.vmem [#allocation5], %s2774
        // Predicated region
        $region29: #{tpu_custom_call.1} parent=27 // pred_check
          %p2776 = pneg %p87
        $region30: #{tpu_custom_call.1} parent=27 // pred_check_branch
          %2778 = sbr.rel (%p2776) target = $region32
        $region31: #{tpu_custom_call.1} parent=27 // pred_region
          _
        $region32: #{tpu_custom_call.1} parent=27 // pred_fallthru
          _
        // Predicated region
        $region33: #{tpu_custom_call.1} parent=27 // pred_check
          %p2779 = pneg %p113
        $region34: #{tpu_custom_call.1} parent=27 // pred_check_branch
          %2781 = sbr.rel (%p2779) target = $region36
        $region35: #{tpu_custom_call.1} parent=27 // pred_region
          %s2783 = ssub.s32 16, 16
          %2784 = vsyncadd %s2769, %s2783
          %s2785 = smul.addr %s22, 16
          %s2786 = scalar_lea.hbm %s3, %s2785
          %s2788 = sshll.u32 %s2771, 4
          %s2789 = int_to_ptr.vmem [resolvable:$true] %s2788
          %2791 = dma.vmem_to_hbm [thread:$0]  %s2789, 16, %s2786, %s2769
        $region36: #{tpu_custom_call.1} parent=27 // pred_fallthru
          _
        // Predicated region
        $region37: #{tpu_custom_call.1} parent=27 // pred_check
          %p2792 = pneg %p139
        $region38: #{tpu_custom_call.1} parent=27 // pred_check_branch
          %2794 = sbr.rel (%p2792) target = $region40
        $region39: #{tpu_custom_call.1} parent=27 // pred_region
          %s2796 = ssub.s32 16, 16
          %2797 = vsyncadd %s2773, %s2796
          %s2798 = smul.addr %s22, 16
          %s2799 = scalar_lea.hbm %s4, %s2798
          %s2801 = sshll.u32 %s2775, 4
          %s2802 = int_to_ptr.vmem [resolvable:$true] %s2801
          %2804 = dma.vmem_to_hbm [thread:$0]  %s2802, 16, %s2799, %s2773
        $region40: #{tpu_custom_call.1} parent=27 // pred_fallthru
          _
      $region28: #{tpu_custom_call.1} parent=5 // pred_fallthru
        _
      %p2805 = scmp.le.s32.totalorder 2, %s17
      // Predicated region
      $region41: #{tpu_custom_call.1} parent=5 // pred_check
        %p2806 = pneg %p2805
      $region42: #{tpu_custom_call.1} parent=5 // pred_check_branch
        %2808 = sbr.rel (%p2806) target = $region44
      $region43: #{tpu_custom_call.1} parent=5 // pred_region
        %s2809 = ssub.s32 %s17, 2
        // Predicated region
        $region45: #{tpu_custom_call.1} parent=43 // pred_check
          %p2810 = pneg %p93
        $region46: #{tpu_custom_call.1} parent=43 // pred_check_branch
          %2812 = sbr.rel (%p2810) target = $region48
        $region47: #{tpu_custom_call.1} parent=43 // pred_region
          %p2813 = scmp.lt.s32.totalorder %s23, 1
          %s2814 = scalar_select %p2813, %s23, 1
          %s2815 = smul.addr %s2814, 32
          %s2816 = smul.addr %s2815, 8
          %s2817 = scalar_lea.vmem %s2, %s2816
        $region48: #{tpu_custom_call.1} parent=43 // pred_fallthru
          _
        // Predicated region
        $region49: #{tpu_custom_call.1} parent=43 // pred_check
          %p2818 = pneg %p119
        $region50: #{tpu_custom_call.1} parent=43 // pred_check_branch
          %2820 = sbr.rel (%p2818) target = $region52
        $region51: #{tpu_custom_call.1} parent=43 // pred_region
          %s2821 = sand.u32 %s104, 1
          %s2822 = scalar_lea.sflag [#allocation4], %s2821
          %s2823 = sand.u32 %s104, 1
          %s2824 = scalar_lea.vmem [#allocation3], %s2823
          %2825 = dma.done %s2822, 16
        $region52: #{tpu_custom_call.1} parent=43 // pred_fallthru
          _
        // Predicated region
        $region53: #{tpu_custom_call.1} parent=43 // pred_check
          %p2826 = pneg %p145
        $region54: #{tpu_custom_call.1} parent=43 // pred_check_branch
          %2828 = sbr.rel (%p2826) target = $region56
        $region55: #{tpu_custom_call.1} parent=43 // pred_region
          %s2829 = sand.u32 %s130, 1
          %s2830 = scalar_lea.sflag [#allocation6], %s2829
          %s2831 = sand.u32 %s130, 1
          %s2832 = scalar_lea.vmem [#allocation5], %s2831
          %2833 = dma.done %s2830, 16
        $region56: #{tpu_custom_call.1} parent=43 // pred_fallthru
          _
      $region44: #{tpu_custom_call.1} parent=5 // pred_fallthru
        _
    $region6: #{tpu_custom_call.1} parent=1 // loop_footer
      %s21 = sadd.s32 1, %s17
    $region7: #{tpu_custom_call.1} parent=1 // loop_footer_branch
      %16 = sbr.rel target = $region3
    $region8: #{tpu_custom_call.1} parent=1 // loop_exit
      _
    %2834 = vsyncpa [#allocation4], 1
    %s2835 = scalar_lea.sflag [#allocation4], 1
    %2836 = vsyncpa %s2835, 1
    %2837 = vsyncpa [#allocation6], 1
    %s2838 = scalar_lea.sflag [#allocation6], 1
    %2839 = vsyncpa %s2838, 1

</llo_original>
